<compile_context>
chip_gen: v7x
topology: tpu7x:2x2x1
jax: 0.10.0
libtpu: 0.0.40
codegen_flags: <defaults>
</compile_context>

<pallas_src>
import functools

import jax
import jax.numpy as jnp
from jax.experimental import pallas as pl
from jax.experimental.pallas import tpu as pltpu

LANE = 128


def _round_up(v, m):
    return -(-v // m) * m


def _tensorcores_per_chip():
    """How many TensorCores a 'parallel' grid axis can be sharded across."""
    try:
        kind = jax.devices()[0].device_kind.lower()
    except Exception:
        return 1
    # v7x (2 TCs) and the megacore chips (v4 / v5p) split parallel grids; the
    # single-TC chips (v5e "v5 lite", v6e "v6 lite") do not.
    if ("v7" in kind) or ("v4" in kind) or ("v5p" in kind):
        return 2
    return 1


def _choose_batch_tile(batch, align, num_tc, max_tb=2048):
    """Pick the batch tile: one grid step per TensorCore (latency-bound regime),
    capped at max_tb rows so VMEM stays trivial on every generation."""
    full = _round_up(max(batch, 1), align)
    if num_tc >= 2 and full > align:
        tile = _round_up(-(-batch // num_tc), align)   # even split across TCs
    else:
        tile = full                                     # grid=(1,) on 1-TC chips
    return max(align, min(tile, _round_up(max_tb, align)))


def _fcnet_kernel(x_ref, w1_ref, wr_ref, b_ref, w2_ref, b2_ref, out_ref, *,
                  n_res, pack_scalar):
    """One batch tile of FCNet.forward.

    x_ref  : (tb, A)              input tile
    w1_ref : (A, L)               Linear(actions -> layer) weight (in, out)
    wr_ref : (max(1, 2*n_res), L, L)  stacked ResBlock weights
    b_ref  : (1+2*n_res, 1, L)    [b1, br1_0, br2_0, br1_1, br2_1, ...]
    w2_ref : (L, out_cols)        final Linear weight, zero-padded to 128 cols
    b2_ref : (1, out_cols)        final bias, zero-padded
    out_ref: (1, tb) if pack_scalar (n == 1) else (tb, out_cols)
    """
    f32 = jnp.float32
    x = x_ref[...]

    # fc[0]: Linear(actions -> layer)
    y = jnp.dot(x, w1_ref[...], preferred_element_type=f32) + b_ref[0]

    # fc[1]: SeqResBlock — each ResBlock: y + Linear(ReLU(Linear(ReLU(y))))
    if n_res <= 4:
        for r in range(n_res):
            h = (jnp.dot(jnp.maximum(y, 0.0), wr_ref[2 * r],
                         preferred_element_type=f32) + b_ref[1 + 2 * r])
            h = (jnp.dot(jnp.maximum(h, 0.0), wr_ref[2 * r + 1],
                         preferred_element_type=f32) + b_ref[2 + 2 * r])
            y = y + h
    else:
        def body(r, y):
            h = (jnp.dot(jnp.maximum(y, 0.0), wr_ref[2 * r],
                         preferred_element_type=f32) + b_ref[1 + 2 * r])
            h = (jnp.dot(jnp.maximum(h, 0.0), wr_ref[2 * r + 1],
                         preferred_element_type=f32) + b_ref[2 + 2 * r])
            return y + h
        y = jax.lax.fori_loop(0, n_res, body, y)

    # fc[2]: ReLU, fc[3]: Linear(layer -> n), lane-padded to out_cols columns.
    z = jnp.dot(jnp.maximum(y, 0.0), w2_ref[...], preferred_element_type=f32)

    if pack_scalar:
        # n == 1: only column 0 of z is real.  Pack 128 batch rows' scalars into
        # one lane-dense row per 128-row chunk (XLU transpose rides a free slot),
        # writing 1/128th of the padded slab.
        tb = z.shape[0]
        pieces = [z[c * LANE:(c + 1) * LANE, :].T[0:1, :]
                  for c in range(tb // LANE)]
        row = jnp.concatenate(pieces, axis=1)            # (1, tb)
        out_ref[...] = (row + b2_ref[0, 0]).astype(out_ref.dtype)
    else:
        out_ref[...] = (z + b2_ref[...]).astype(out_ref.dtype)


def init_params(key, actions, layer, n=1, n_res=1):
    """Deterministic synthetic parameters (shapes match the torch module)."""
    keys = jax.random.split(key, max(4 + 2 * n_res, 4))
    it = iter(keys)

    def w(shape, fan_in):
        return (jax.random.normal(next(it), shape, jnp.float32)
                / jnp.sqrt(jnp.float32(fan_in)))

    w1 = w((actions, layer), actions)
    if n_res > 0:
        wr = jnp.stack([w((layer, layer), layer) for _ in range(2 * n_res)])
    else:
        wr = jnp.zeros((1, layer, layer), jnp.float32)   # unused placeholder
    b = jax.random.normal(next(it), (1 + 2 * n_res, layer), jnp.float32) * 0.01

    n_cols = max(LANE, pl.cdiv(n, LANE) * LANE)          # lane-dense output width
    w2 = w((layer, n), layer)
    b2 = jax.random.normal(next(it), (1, n), jnp.float32) * 0.01
    w2p = jnp.zeros((layer, n_cols), jnp.float32).at[:, :n].set(w2)
    b2p = jnp.zeros((1, n_cols), jnp.float32).at[:, :n].set(b2)

    return dict(w1=w1, wr=wr, b=b, w2p=w2p, b2p=b2p, n=n, n_res=n_res)


def fcnet_reference(x, params):
    """Pure-JAX reference of FCNet.forward (for correctness checking)."""
    n, n_res = params["n"], params["n_res"]
    y = x @ params["w1"] + params["b"][0]
    for r in range(n_res):
        h = jnp.maximum(y, 0.0) @ params["wr"][2 * r] + params["b"][1 + 2 * r]
        h = jnp.maximum(h, 0.0) @ params["wr"][2 * r + 1] + params["b"][2 + 2 * r]
        y = y + h
    z = jnp.maximum(y, 0.0) @ params["w2p"][:, :n] + params["b2p"][0, :n]
    return z[:, 0] if n == 1 else z


def fcnet_forward(x, params, *, max_batch_tile=2048):
    """FCNet.forward via one fused Pallas kernel, tiled over the batch."""
    n_in, actions = x.shape
    n_out = int(params["n"])
    n_res = int(params["n_res"])

    w1, wr, b = params["w1"], params["wr"], params["b"]
    w2p, b2p = params["w2p"], params["b2p"]
    layer = w1.shape[1]
    out_cols = w2p.shape[1]

    if wr.shape[0] == 0:                      # n_res == 0: avoid zero-sized operand
        wr = jnp.zeros((1, layer, layer), w1.dtype)
    b3 = b.reshape(b.shape[0], 1, layer)      # (1+2*n_res, 1, L) for leading-dim indexing

    pack_scalar = (n_out == 1)
    align = LANE if pack_scalar else 8
    num_tc = _tensorcores_per_chip()
    tb = _choose_batch_tile(n_in, align, num_tc, max_batch_tile)
    n_pad = pl.cdiv(n_in, tb) * tb
    if n_pad != n_in:
        # Only hit when the batch doesn't divide the tile; padded rows are
        # discarded by the slice right after the kernel.
        x = jnp.pad(x, ((0, n_pad - n_in), (0, 0)))
    grid = (n_pad // tb,)

    if pack_scalar:
        out_shape = jax.ShapeDtypeStruct((1, n_pad), jnp.float32)
        out_spec = pl.BlockSpec((1, tb), lambda i: (0, i))
        out_bytes = 4 * n_pad
    else:
        out_shape = jax.ShapeDtypeStruct((n_pad, out_cols), jnp.float32)
        out_spec = pl.BlockSpec((tb, out_cols), lambda i: (i, 0))
        out_bytes = 4 * n_pad * out_cols

    def full_spec(arr):
        nd = arr.ndim
        return pl.BlockSpec(arr.shape, lambda i, _nd=nd: (0,) * _nd)

    flops = 2 * n_pad * (actions * layer + 2 * n_res * layer * layer
                         + layer * out_cols)
    bytes_accessed = 4 * (x.size + w1.size + wr.size + b3.size
                          + w2p.size + b2p.size) + out_bytes

    kernel = functools.partial(_fcnet_kernel, n_res=n_res,
                               pack_scalar=pack_scalar)
    out = pl.pallas_call(
        kernel,
        grid=grid,
        in_specs=[
            pl.BlockSpec((tb, actions), lambda i: (i, 0)),
            full_spec(w1), full_spec(wr), full_spec(b3),
            full_spec(w2p), full_spec(b2p),
        ],
        out_specs=out_spec,
        out_shape=out_shape,
        compiler_params=pltpu.CompilerParams(
            dimension_semantics=("parallel",)),
        cost_estimate=pl.CostEstimate(flops=int(flops), transcendentals=0,
                                      bytes_accessed=int(bytes_accessed)),
    )(x, w1, wr, b3, w2p, b2p)

    if pack_scalar:
        return out[0, :n_in]                  # matches x.squeeze_(1) when n == 1
    return out[:n_in, :n_out]


if __name__ == "__main__":
    key = jax.random.PRNGKey(0)

    # --- main check: n == 1 (packed scalar output), shallow residual stack ---
    actions, layer, n, n_res = 8, 64, 1, 1
    batch = 512
    k_x, k_p, k_x2, k_p2 = jax.random.split(key, 4)
    params = init_params(k_p, actions, layer, n=n, n_res=n_res)
    x = jax.random.normal(k_x, (batch, actions), jnp.float32)

    z = fcnet_forward(x, params)
    jax.block_until_ready(z)
    z_ref = fcnet_reference(x, params)
    assert z.shape == (batch,), z.shape
    assert bool(jnp.all(jnp.isfinite(z)))
    assert bool(jnp.allclose(z, z_ref, atol=1e-4, rtol=1e-4)), (
        float(jnp.max(jnp.abs(z - z_ref))))

    # --- secondary check: n > 1 output path + fori_loop res-block path ---
    actions2, layer2, n2, n_res2 = 12, 64, 4, 5
    batch2 = 192
    params2 = init_params(k_p2, actions2, layer2, n=n2, n_res=n_res2)
    x2 = jax.random.normal(k_x2, (batch2, actions2), jnp.float32)

    z2 = fcnet_forward(x2, params2)
    jax.block_until_ready(z2)
    z2_ref = fcnet_reference(x2, params2)
    assert z2.shape == (batch2, n2), z2.shape
    assert bool(jnp.all(jnp.isfinite(z2)))
    assert bool(jnp.allclose(z2, z2_ref, atol=1e-3, rtol=1e-3)), (
        float(jnp.max(jnp.abs(z2 - z2_ref))))

    print("KERNEL_OK")
</pallas_src>

<mosaic_0001>
module attributes {stable_mosaic.version = 11 : i64} {
  func.func @_fcnet_kernel(%arg0: i32, %arg1: memref<512x8xf32, #tpu.memory_space<vmem>>, %arg2: memref<8x64xf32, #tpu.memory_space<vmem>>, %arg3: memref<2x64x64xf32, #tpu.memory_space<vmem>>, %arg4: memref<3x1x64xf32, #tpu.memory_space<vmem>>, %arg5: memref<64x128xf32, #tpu.memory_space<vmem>>, %arg6: memref<1x128xf32, #tpu.memory_space<vmem>>, %arg7: memref<1x512xf32, #tpu.memory_space<vmem>>) attributes {dimension_semantics = [#tpu.dimension_semantics<parallel>], iteration_bounds = array<i64: 1>, scalar_prefetch = 0 : i64, scratch_operands = 0 : i64, tpu.core_type = #tpu.core_type<tc>, window_params = [{transform_indices = @transform_0, window_bounds = array<i64: 512, 8>}, {pipeline_mode = #tpu.pipeline_mode<synchronous>, transform_indices = @transform_1, window_bounds = array<i64: 8, 64>}, {pipeline_mode = #tpu.pipeline_mode<synchronous>, transform_indices = @transform_2, window_bounds = array<i64: 2, 64, 64>}, {pipeline_mode = #tpu.pipeline_mode<synchronous>, transform_indices = @transform_3, window_bounds = array<i64: 3, 1, 64>}, {pipeline_mode = #tpu.pipeline_mode<synchronous>, transform_indices = @transform_4, window_bounds = array<i64: 64, 128>}, {pipeline_mode = #tpu.pipeline_mode<synchronous>, transform_indices = @transform_5, window_bounds = array<i64: 1, 128>}, {transform_indices = @transform_6, window_bounds = array<i64: 1, 512>}]} {
    %c0 = arith.constant 0 : index
    %c0_0 = arith.constant 0 : index
    %0 = vector.load %arg1[%c0, %c0_0] : memref<512x8xf32, #tpu.memory_space<vmem>>, vector<512x8xf32>
    %c0_1 = arith.constant 0 : index
    %c0_2 = arith.constant 0 : index
    %1 = vector.load %arg2[%c0_1, %c0_2] : memref<8x64xf32, #tpu.memory_space<vmem>>, vector<8x64xf32>
    %cst = arith.constant dense<0.000000e+00> : vector<512x64xf32>
    %2 = tpu.matmul %0, %1, %cst {dimension_numbers = #tpu.dot_dimension_numbers<[1], [0], [0], [1], [0, 0, 1, 1], [], []>} : vector<512x8xf32>, vector<8x64xf32>, vector<512x64xf32> -> vector<512x64xf32>
    %c0_3 = arith.constant 0 : index
    %c0_4 = arith.constant 0 : index
    %c0_5 = arith.constant 0 : index
    %3 = vector.load %arg4[%c0_3, %c0_4, %c0_5] : memref<3x1x64xf32, #tpu.memory_space<vmem>>, vector<1x1x64xf32>
    %4 = vector.shape_cast %3 : vector<1x1x64xf32> to vector<1x64xf32>
    %5 = vector.broadcast %4 : vector<1x64xf32> to vector<512x64xf32>
    %6 = arith.addf %2, %5 : vector<512x64xf32>
    %cst_6 = arith.constant 0.000000e+00 : f32
    %7 = vector.broadcast %cst_6 : f32 to vector<512x64xf32>
    %8 = arith.maximumf %6, %7 : vector<512x64xf32>
    %c0_7 = arith.constant 0 : index
    %c0_8 = arith.constant 0 : index
    %c0_9 = arith.constant 0 : index
    %9 = vector.load %arg3[%c0_7, %c0_8, %c0_9] : memref<2x64x64xf32, #tpu.memory_space<vmem>>, vector<1x64x64xf32>
    %10 = vector.shape_cast %9 : vector<1x64x64xf32> to vector<64x64xf32>
    %cst_10 = arith.constant dense<0.000000e+00> : vector<512x64xf32>
    %11 = tpu.matmul %8, %10, %cst_10 {dimension_numbers = #tpu.dot_dimension_numbers<[1], [0], [0], [1], [0, 0, 1, 1], [], []>} : vector<512x64xf32>, vector<64x64xf32>, vector<512x64xf32> -> vector<512x64xf32>
    %c1 = arith.constant 1 : index
    %c0_11 = arith.constant 0 : index
    %c0_12 = arith.constant 0 : index
    %12 = vector.load %arg4[%c1, %c0_11, %c0_12] : memref<3x1x64xf32, #tpu.memory_space<vmem>>, vector<1x1x64xf32>
    %13 = vector.shape_cast %12 : vector<1x1x64xf32> to vector<1x64xf32>
    %14 = vector.broadcast %13 : vector<1x64xf32> to vector<512x64xf32>
    %15 = arith.addf %11, %14 : vector<512x64xf32>
    %cst_13 = arith.constant 0.000000e+00 : f32
    %16 = vector.broadcast %cst_13 : f32 to vector<512x64xf32>
    %17 = arith.maximumf %15, %16 : vector<512x64xf32>
    %c1_14 = arith.constant 1 : index
    %c0_15 = arith.constant 0 : index
    %c0_16 = arith.constant 0 : index
    %18 = vector.load %arg3[%c1_14, %c0_15, %c0_16] : memref<2x64x64xf32, #tpu.memory_space<vmem>>, vector<1x64x64xf32>
    %19 = vector.shape_cast %18 : vector<1x64x64xf32> to vector<64x64xf32>
    %cst_17 = arith.constant dense<0.000000e+00> : vector<512x64xf32>
    %20 = tpu.matmul %17, %19, %cst_17 {dimension_numbers = #tpu.dot_dimension_numbers<[1], [0], [0], [1], [0, 0, 1, 1], [], []>} : vector<512x64xf32>, vector<64x64xf32>, vector<512x64xf32> -> vector<512x64xf32>
    %c2 = arith.constant 2 : index
    %c0_18 = arith.constant 0 : index
    %c0_19 = arith.constant 0 : index
    %21 = vector.load %arg4[%c2, %c0_18, %c0_19] : memref<3x1x64xf32, #tpu.memory_space<vmem>>, vector<1x1x64xf32>
    %22 = vector.shape_cast %21 : vector<1x1x64xf32> to vector<1x64xf32>
    %23 = vector.broadcast %22 : vector<1x64xf32> to vector<512x64xf32>
    %24 = arith.addf %20, %23 : vector<512x64xf32>
    %25 = arith.addf %6, %24 : vector<512x64xf32>
    %cst_20 = arith.constant 0.000000e+00 : f32
    %26 = vector.broadcast %cst_20 : f32 to vector<512x64xf32>
    %27 = arith.maximumf %25, %26 : vector<512x64xf32>
    %c0_21 = arith.constant 0 : index
    %c0_22 = arith.constant 0 : index
    %28 = vector.load %arg5[%c0_21, %c0_22] : memref<64x128xf32, #tpu.memory_space<vmem>>, vector<64x128xf32>
    %cst_23 = arith.constant dense<0.000000e+00> : vector<512x128xf32>
    %29 = tpu.matmul %27, %28, %cst_23 {dimension_numbers = #tpu.dot_dimension_numbers<[1], [0], [0], [1], [0, 0, 1, 1], [], []>} : vector<512x64xf32>, vector<64x128xf32>, vector<512x128xf32> -> vector<512x128xf32>
    %30 = vector.extract_strided_slice %29 {offsets = [0, 0], sizes = [128, 128], strides = [1, 1]} : vector<512x128xf32> to vector<128x128xf32>
    %31 = tpu.transpose %30, [1, 0] : vector<128x128xf32> -> vector<128x128xf32>
    %32 = vector.extract_strided_slice %31 {offsets = [0, 0], sizes = [1, 128], strides = [1, 1]} : vector<128x128xf32> to vector<1x128xf32>
    %33 = vector.extract_strided_slice %29 {offsets = [128, 0], sizes = [128, 128], strides = [1, 1]} : vector<512x128xf32> to vector<128x128xf32>
    %34 = tpu.transpose %33, [1, 0] : vector<128x128xf32> -> vector<128x128xf32>
    %35 = vector.extract_strided_slice %34 {offsets = [0, 0], sizes = [1, 128], strides = [1, 1]} : vector<128x128xf32> to vector<1x128xf32>
    %36 = vector.extract_strided_slice %29 {offsets = [256, 0], sizes = [128, 128], strides = [1, 1]} : vector<512x128xf32> to vector<128x128xf32>
    %37 = tpu.transpose %36, [1, 0] : vector<128x128xf32> -> vector<128x128xf32>
    %38 = vector.extract_strided_slice %37 {offsets = [0, 0], sizes = [1, 128], strides = [1, 1]} : vector<128x128xf32> to vector<1x128xf32>
    %39 = vector.extract_strided_slice %29 {offsets = [384, 0], sizes = [128, 128], strides = [1, 1]} : vector<512x128xf32> to vector<128x128xf32>
    %40 = tpu.transpose %39, [1, 0] : vector<128x128xf32> -> vector<128x128xf32>
    %41 = vector.extract_strided_slice %40 {offsets = [0, 0], sizes = [1, 128], strides = [1, 1]} : vector<128x128xf32> to vector<1x128xf32>
    %42 = tpu.concatenate %32, %35, %38, %41 in 1 : vector<1x128xf32>, vector<1x128xf32>, vector<1x128xf32>, vector<1x128xf32> -> vector<1x512xf32>
    %c0_24 = arith.constant 0 : index
    %c0_25 = arith.constant 0 : index
    %43 = vector.load %arg6[%c0_24, %c0_25] : memref<1x128xf32, #tpu.memory_space<vmem>>, vector<1x1xf32>
    %44 = vector.extract %43[0, 0] : f32 from vector<1x1xf32>
    %45 = vector.broadcast %44 : f32 to vector<1x512xf32>
    %46 = arith.addf %42, %45 : vector<1x512xf32>
    %c0_26 = arith.constant 0 : index
    %c0_27 = arith.constant 0 : index
    %47 = vector.load %arg7[%c0_26, %c0_27] : memref<1x512xf32, #tpu.memory_space<vmem>>, vector<1x512xf32>
    tpu.vector_store %arg7[%c0_26, %c0_27], %46 {strides = array<i32>} : memref<1x512xf32, #tpu.memory_space<vmem>>, vector<1x512xf32>,
    return
  }
  func.func @transform_0(%arg0: i32) -> (i32, i32) {
    %c0_i32 = arith.constant 0 : i32
    %c0_i32_0 = arith.constant 0 : i32
    return %arg0, %c0_i32 : i32, i32
  }
  func.func @transform_1(%arg0: i32) -> (i32, i32) {
    %c0_i32 = arith.constant 0 : i32
    %c0_i32_0 = arith.constant 0 : i32
    %c0_i32_1 = arith.constant 0 : i32
    return %c0_i32, %c0_i32_0 : i32, i32
  }
  func.func @transform_2(%arg0: i32) -> (i32, i32, i32) {
    %c0_i32 = arith.constant 0 : i32
    %c0_i32_0 = arith.constant 0 : i32
    %c0_i32_1 = arith.constant 0 : i32
    %c0_i32_2 = arith.constant 0 : i32
    return %c0_i32, %c0_i32_0, %c0_i32_1 : i32, i32, i32
  }
  func.func @transform_3(%arg0: i32) -> (i32, i32, i32) {
    %c0_i32 = arith.constant 0 : i32
    %c0_i32_0 = arith.constant 0 : i32
    %c0_i32_1 = arith.constant 0 : i32
    %c0_i32_2 = arith.constant 0 : i32
    return %c0_i32, %c0_i32_0, %c0_i32_1 : i32, i32, i32
  }
  func.func @transform_4(%arg0: i32) -> (i32, i32) {
    %c0_i32 = arith.constant 0 : i32
    %c0_i32_0 = arith.constant 0 : i32
    %c0_i32_1 = arith.constant 0 : i32
    return %c0_i32, %c0_i32_0 : i32, i32
  }
  func.func @transform_5(%arg0: i32) -> (i32, i32) {
    %c0_i32 = arith.constant 0 : i32
    %c0_i32_0 = arith.constant 0 : i32
    %c0_i32_1 = arith.constant 0 : i32
    return %c0_i32, %c0_i32_0 : i32, i32
  }
  func.func @transform_6(%arg0: i32) -> (i32, i32) {
    %c0_i32 = arith.constant 0 : i32
    %c0_i32_0 = arith.constant 0 : i32
    return %c0_i32, %arg0 : i32, i32
  }
}

</mosaic_0001>

<llo_original>
// kernel: tpu_custom_call.1
$region0: #{tpu_custom_call.1}
  #allocation0 [shape = 'u32[]', space=smem, size = 0x4, offset = 0x4, fixed_abs, tag = 'smem constant byte address 0x4 - core index']
  #allocation1 [shape = 'u32[144,128]{1,0:T(1,128)}', space=vmem, size = 0x12000, scoped, tag = 'internal scratch']
  %s0 = inlined_call_operand.vmem [shape: f32[512,8], index: 0, kind: input, shape index: {}]
  %s1 = inlined_call_operand.vmem [shape: f32[8,64], index: 1, kind: input, shape index: {}]
  %s2 = inlined_call_operand.vmem [shape: f32[2,64,64], index: 2, kind: input, shape index: {}]
  %s3 = inlined_call_operand.vmem [shape: f32[3,1,64], index: 3, kind: input, shape index: {}]
  %s4 = inlined_call_operand.vmem [shape: f32[64,128], index: 4, kind: input, shape index: {}]
  %s5 = inlined_call_operand.vmem [shape: f32[1,128], index: 5, kind: input, shape index: {}]
  %s6 = inlined_call_operand.hbm [shape: f32[1,512], index: 6, kind: output, shape index: {}]
  %s7 = sld [smem:[#allocation0]]
  $region34: #{tpu_custom_call.1} parent=0
    _
  %s9 = ssub.s32 1, %s7
  %s10 = scalar_select 0, %s9, %s7
  $region1: #{tpu_custom_call.1} parent=0
    #allocation2 [shape = 'u8[2048]{0}', space=vmem, size = 0x800, scoped, tag = 'output window, operand 0, single buffered']
    #allocation3 [shape = 's32[1]{0}', space=sflag, size = 0x4, scoped, tag = 'scoped memory for tpu_custom_call.1']
    %11 = vsyncpa [#allocation3], 0
    // Predicated region
    $region2: #{tpu_custom_call.1} parent=1 // pred_check
      _
    $region3: #{tpu_custom_call.1} parent=1 // pred_check_branch
      %13 = sbr.rel (0) target = $region5
    $region4: #{tpu_custom_call.1} parent=1 // pred_region
      _
    $region5: #{tpu_custom_call.1} parent=1 // pred_fallthru
      _
    // Predicated region
    $region6: #{tpu_custom_call.1} parent=1 // pred_check
      _
    $region7: #{tpu_custom_call.1} parent=1 // pred_check_branch
      %15 = sbr.rel (0) target = $region9
    $region8: #{tpu_custom_call.1} parent=1 // pred_region
      _
    $region9: #{tpu_custom_call.1} parent=1 // pred_fallthru
      _
    // Predicated region
    $region10: #{tpu_custom_call.1} parent=1 // pred_check
      _
    $region11: #{tpu_custom_call.1} parent=1 // pred_check_branch
      %17 = sbr.rel (0) target = $region13
    $region12: #{tpu_custom_call.1} parent=1 // pred_region
      _
    $region13: #{tpu_custom_call.1} parent=1 // pred_fallthru
      _
    // Predicated region
    $region14: #{tpu_custom_call.1} parent=1 // pred_check
      _
    $region15: #{tpu_custom_call.1} parent=1 // pred_check_branch
      %19 = sbr.rel (0) target = $region17
    $region16: #{tpu_custom_call.1} parent=1 // pred_region
      _
    $region17: #{tpu_custom_call.1} parent=1 // pred_fallthru
      _
    // Predicated region
    $region18: #{tpu_custom_call.1} parent=1 // pred_check
      _
    $region19: #{tpu_custom_call.1} parent=1 // pred_check_branch
      %21 = sbr.rel (0) target = $region21
    $region20: #{tpu_custom_call.1} parent=1 // pred_region
      _
    $region21: #{tpu_custom_call.1} parent=1 // pred_fallthru
      _
    // Predicated region
    $region22: #{tpu_custom_call.1} parent=1 // pred_check
      _
    $region23: #{tpu_custom_call.1} parent=1 // pred_check_branch
      %23 = sbr.rel (0) target = $region25
    $region24: #{tpu_custom_call.1} parent=1 // pred_region
      _
    $region25: #{tpu_custom_call.1} parent=1 // pred_fallthru
      _
    %v24 = vld [vmem:[%s0] sm:$0xff]
    %v25 = vld [vmem:[%s0 + $0x8] sm:$0xff]
    %v26 = vld [vmem:[%s0 + $0x10] sm:$0xff]
    %v27 = vld [vmem:[%s0 + $0x18] sm:$0xff]
    %v28 = vld [vmem:[%s0 + $0x20] sm:$0xff]
    %v29 = vld [vmem:[%s0 + $0x28] sm:$0xff]
    %v30 = vld [vmem:[%s0 + $0x30] sm:$0xff]
    %v31 = vld [vmem:[%s0 + $0x38] sm:$0xff]
    %v32 = vld [vmem:[%s0 + $0x40] sm:$0xff]
    %v33 = vld [vmem:[%s0 + $0x48] sm:$0xff]
    %v34 = vld [vmem:[%s0 + $0x50] sm:$0xff]
    %v35 = vld [vmem:[%s0 + $0x58] sm:$0xff]
    %v36 = vld [vmem:[%s0 + $0x60] sm:$0xff]
    %v37 = vld [vmem:[%s0 + $0x68] sm:$0xff]
    %v38 = vld [vmem:[%s0 + $0x70] sm:$0xff]
    %v39 = vld [vmem:[%s0 + $0x78] sm:$0xff]
    %v40 = vld [vmem:[%s0 + $0x80] sm:$0xff]
    %v41 = vld [vmem:[%s0 + $0x88] sm:$0xff]
    %v42 = vld [vmem:[%s0 + $0x90] sm:$0xff]
    %v43 = vld [vmem:[%s0 + $0x98] sm:$0xff]
    %v44 = vld [vmem:[%s0 + $0xa0] sm:$0xff]
    %v45 = vld [vmem:[%s0 + $0xa8] sm:$0xff]
    %v46 = vld [vmem:[%s0 + $0xb0] sm:$0xff]
    %v47 = vld [vmem:[%s0 + $0xb8] sm:$0xff]
    %v48 = vld [vmem:[%s0 + $0xc0] sm:$0xff]
    %v49 = vld [vmem:[%s0 + $0xc8] sm:$0xff]
    %v50 = vld [vmem:[%s0 + $0xd0] sm:$0xff]
    %v51 = vld [vmem:[%s0 + $0xd8] sm:$0xff]
    %v52 = vld [vmem:[%s0 + $0xe0] sm:$0xff]
    %v53 = vld [vmem:[%s0 + $0xe8] sm:$0xff]
    %v54 = vld [vmem:[%s0 + $0xf0] sm:$0xff]
    %v55 = vld [vmem:[%s0 + $0xf8] sm:$0xff]
    %v56 = vld [vmem:[%s0 + $0x100] sm:$0xff]
    %v57 = vld [vmem:[%s0 + $0x108] sm:$0xff]
    %v58 = vld [vmem:[%s0 + $0x110] sm:$0xff]
    %v59 = vld [vmem:[%s0 + $0x118] sm:$0xff]
    %v60 = vld [vmem:[%s0 + $0x120] sm:$0xff]
    %v61 = vld [vmem:[%s0 + $0x128] sm:$0xff]
    %v62 = vld [vmem:[%s0 + $0x130] sm:$0xff]
    %v63 = vld [vmem:[%s0 + $0x138] sm:$0xff]
    %v64 = vld [vmem:[%s0 + $0x140] sm:$0xff]
    %v65 = vld [vmem:[%s0 + $0x148] sm:$0xff]
    %v66 = vld [vmem:[%s0 + $0x150] sm:$0xff]
    %v67 = vld [vmem:[%s0 + $0x158] sm:$0xff]
    %v68 = vld [vmem:[%s0 + $0x160] sm:$0xff]
    %v69 = vld [vmem:[%s0 + $0x168] sm:$0xff]
    %v70 = vld [vmem:[%s0 + $0x170] sm:$0xff]
    %v71 = vld [vmem:[%s0 + $0x178] sm:$0xff]
    %v72 = vld [vmem:[%s0 + $0x180] sm:$0xff]
    %v73 = vld [vmem:[%s0 + $0x188] sm:$0xff]
    %v74 = vld [vmem:[%s0 + $0x190] sm:$0xff]
    %v75 = vld [vmem:[%s0 + $0x198] sm:$0xff]
    %v76 = vld [vmem:[%s0 + $0x1a0] sm:$0xff]
    %v77 = vld [vmem:[%s0 + $0x1a8] sm:$0xff]
    %v78 = vld [vmem:[%s0 + $0x1b0] sm:$0xff]
    %v79 = vld [vmem:[%s0 + $0x1b8] sm:$0xff]
    %v80 = vld [vmem:[%s0 + $0x1c0] sm:$0xff]
    %v81 = vld [vmem:[%s0 + $0x1c8] sm:$0xff]
    %v82 = vld [vmem:[%s0 + $0x1d0] sm:$0xff]
    %v83 = vld [vmem:[%s0 + $0x1d8] sm:$0xff]
    %v84 = vld [vmem:[%s0 + $0x1e0] sm:$0xff]
    %v85 = vld [vmem:[%s0 + $0x1e8] sm:$0xff]
    %v86 = vld [vmem:[%s0 + $0x1f0] sm:$0xff]
    %v87 = vld [vmem:[%s0 + $0x1f8] sm:$0xff]
    %v88 = vld [vmem:[%s1] sm:$0xff]
    %v89 = vld [vmem:[%s3] sm:$0x1]
    %v91 = vlaneseq
    %v92 = vshrl.u32 %v91, 7
    %v93 = vsub.s32 0, %v92
    %v94 = vrot.slane %v89, %v93
    %vm96 = vcmask 64512
    %v98 = vsel %vm96, %v24, 0
    %v101 = vsel %vm96, %v25, 0
    %v104 = vsel %vm96, %v26, 0
    %v107 = vsel %vm96, %v27, 0
    %v110 = vsel %vm96, %v28, 0
    %v113 = vsel %vm96, %v29, 0
    %v116 = vsel %vm96, %v30, 0
    %v119 = vsel %vm96, %v31, 0
    %v122 = vsel %vm96, %v32, 0
    %v125 = vsel %vm96, %v33, 0
    %v128 = vsel %vm96, %v34, 0
    %v131 = vsel %vm96, %v35, 0
    %v134 = vsel %vm96, %v36, 0
    %v137 = vsel %vm96, %v37, 0
    %v140 = vsel %vm96, %v38, 0
    %v143 = vsel %vm96, %v39, 0
    %v146 = vsel %vm96, %v40, 0
    %v149 = vsel %vm96, %v41, 0
    %v152 = vsel %vm96, %v42, 0
    %v155 = vsel %vm96, %v43, 0
    %v158 = vsel %vm96, %v44, 0
    %v161 = vsel %vm96, %v45, 0
    %v164 = vsel %vm96, %v46, 0
    %v167 = vsel %vm96, %v47, 0
    %v170 = vsel %vm96, %v48, 0
    %v173 = vsel %vm96, %v49, 0
    %v176 = vsel %vm96, %v50, 0
    %v179 = vsel %vm96, %v51, 0
    %v182 = vsel %vm96, %v52, 0
    %v185 = vsel %vm96, %v53, 0
    %v188 = vsel %vm96, %v54, 0
    %v191 = vsel %vm96, %v55, 0
    %v194 = vsel %vm96, %v56, 0
    %v197 = vsel %vm96, %v57, 0
    %v200 = vsel %vm96, %v58, 0
    %v203 = vsel %vm96, %v59, 0
    %v206 = vsel %vm96, %v60, 0
    %v209 = vsel %vm96, %v61, 0
    %v212 = vsel %vm96, %v62, 0
    %v215 = vsel %vm96, %v63, 0
    %v218 = vsel %vm96, %v64, 0
    %v221 = vsel %vm96, %v65, 0
    %v224 = vsel %vm96, %v66, 0
    %v227 = vsel %vm96, %v67, 0
    %v230 = vsel %vm96, %v68, 0
    %v233 = vsel %vm96, %v69, 0
    %v236 = vsel %vm96, %v70, 0
    %v239 = vsel %vm96, %v71, 0
    %v242 = vsel %vm96, %v72, 0
    %v245 = vsel %vm96, %v73, 0
    %v248 = vsel %vm96, %v74, 0
    %v251 = vsel %vm96, %v75, 0
    %v254 = vsel %vm96, %v76, 0
    %v257 = vsel %vm96, %v77, 0
    %v260 = vsel %vm96, %v78, 0
    %v263 = vsel %vm96, %v79, 0
    %v266 = vsel %vm96, %v80, 0
    %v269 = vsel %vm96, %v81, 0
    %v272 = vsel %vm96, %v82, 0
    %v275 = vsel %vm96, %v83, 0
    %v278 = vsel %vm96, %v84, 0
    %v281 = vsel %vm96, %v85, 0
    %v284 = vsel %vm96, %v86, 0
    %v287 = vsel %vm96, %v87, 0
    %289 = vmatprep.subr.mxu0 0.0
    %290 = vmatpush1.msra.mxu0 %v88
    %291 = vmatprep.subr.mxu0 0.0
    %292 = vmatpush1.msra.mxu0 0.0
    %293 = vmatprep.subr.mxu0 0.0
    %294 = vmatpush1.msra.mxu0 0.0
    %295 = vmatprep.subr.mxu0 0.0
    %296 = vmatpush1.msra.mxu0 0.0
    %297 = vmatprep.subr.mxu0 0.0
    %298 = vmatpush1.msra.mxu0 0.0
    %299 = vmatprep.subr.mxu0 0.0
    %300 = vmatpush1.msra.mxu0 0.0
    %301 = vmatprep.subr.mxu0 0.0
    %302 = vmatpush1.msra.mxu0 0.0
    %303 = vmatprep.subr.mxu0 0.0
    %304 = vmatpush1.msra.mxu0 0.0
    %305 = vmatprep.subr.mxu0 0.0
    %306 = vmatpush1.msra.mxu0 0.0
    %307 = vmatprep.subr.mxu0 0.0
    %308 = vmatpush1.msra.mxu0 0.0
    %309 = vmatprep.subr.mxu0 0.0
    %310 = vmatpush1.msra.mxu0 0.0
    %311 = vmatprep.subr.mxu0 0.0
    %312 = vmatpush1.msra.mxu0 0.0
    %313 = vmatprep.subr.mxu0 0.0
    %314 = vmatpush1.msra.mxu0 0.0
    %315 = vmatprep.subr.mxu0 0.0
    %316 = vmatpush1.msra.mxu0 0.0
    %317 = vmatprep.subr.mxu0 0.0
    %318 = vmatpush1.msra.mxu0 0.0
    %319 = vmatprep.subr.mxu0 0.0
    %320 = vmatpush1.msra.mxu0 0.0
    %321 = vmatprep.subr.mxu0 0.0
    %322 = vmatpush1.msra.mxu0 0.0
    %323 = vmatprep.subr.mxu0 0.0
    %324 = vmatpush1.msra.mxu0 0.0
    %325 = vmatprep.subr.mxu0 0.0
    %326 = vmatpush1.msra.mxu0 0.0
    %327 = vmatprep.subr.mxu0 0.0
    %328 = vmatpush1.msra.mxu0 0.0
    %329 = vmatprep.subr.mxu0 0.0
    %330 = vmatpush1.msra.mxu0 0.0
    %331 = vmatprep.subr.mxu0 0.0
    %332 = vmatpush1.msra.mxu0 0.0
    %333 = vmatprep.subr.mxu0 0.0
    %334 = vmatpush1.msra.mxu0 0.0
    %335 = vmatprep.subr.mxu0 0.0
    %336 = vmatpush1.msra.mxu0 0.0
    %337 = vmatprep.subr.mxu0 0.0
    %338 = vmatpush1.msra.mxu0 0.0
    %339 = vmatprep.subr.mxu0 0.0
    %340 = vmatpush1.msra.mxu0 0.0
    %341 = vmatprep.subr.mxu0 0.0
    %342 = vmatpush1.msra.mxu0 0.0
    %343 = vmatprep.subr.mxu0 0.0
    %344 = vmatpush1.msra.mxu0 0.0
    %345 = vmatprep.subr.mxu0 0.0
    %346 = vmatpush1.msra.mxu0 0.0
    %347 = vmatprep.subr.mxu0 0.0
    %348 = vmatpush1.msra.mxu0 0.0
    %349 = vmatprep.subr.mxu0 0.0
    %350 = vmatpush1.msra.mxu0 0.0
    %351 = vmatprep.subr.mxu0 0.0
    %352 = vmatpush1.msra.mxu0 0.0
    %353 = vmatprep.mubr.f32.mxu0 0.0
    %354 = vmatmul.mubr.f32.gmra.mrb[0].mxu0 %v98
    %v355 = vpop.f32.mrb[0].mxu0
    %v356 = vadd.f32 %v94, %v355
    %v357 = vpop.f32.mrb[0].mxu0
    %358 = vmatprep.mubr.f32.mxu0 0.0
    %359 = vmatmul.mubr.f32.gmra.mrb[0].mxu0 %v101
    %v360 = vpop.f32.mrb[0].mxu0
    %v361 = vadd.f32 %v94, %v360
    %v362 = vpop.f32.mrb[0].mxu0
    %363 = vmatprep.mubr.f32.mxu0 0.0
    %364 = vmatmul.mubr.f32.gmra.mrb[0].mxu0 %v104
    %v365 = vpop.f32.mrb[0].mxu0
    %v366 = vadd.f32 %v94, %v365
    %v367 = vpop.f32.mrb[0].mxu0
    %368 = vmatprep.mubr.f32.mxu0 0.0
    %369 = vmatmul.mubr.f32.gmra.mrb[0].mxu0 %v107
    %v370 = vpop.f32.mrb[0].mxu0
    %v371 = vadd.f32 %v94, %v370
    %v372 = vpop.f32.mrb[0].mxu0
    %373 = vmatprep.mubr.f32.mxu0 0.0
    %374 = vmatmul.mubr.f32.gmra.mrb[0].mxu0 %v110
    %v375 = vpop.f32.mrb[0].mxu0
    %v376 = vadd.f32 %v94, %v375
    %v377 = vpop.f32.mrb[0].mxu0
    %378 = vmatprep.mubr.f32.mxu0 0.0
    %379 = vmatmul.mubr.f32.gmra.mrb[0].mxu0 %v113
    %v380 = vpop.f32.mrb[0].mxu0
    %v381 = vadd.f32 %v94, %v380
    %v382 = vpop.f32.mrb[0].mxu0
    %383 = vmatprep.mubr.f32.mxu0 0.0
    %384 = vmatmul.mubr.f32.gmra.mrb[0].mxu0 %v116
    %v385 = vpop.f32.mrb[0].mxu0
    %v386 = vadd.f32 %v94, %v385
    %v387 = vpop.f32.mrb[0].mxu0
    %388 = vmatprep.mubr.f32.mxu0 0.0
    %389 = vmatmul.mubr.f32.gmra.mrb[0].mxu0 %v119
    %v390 = vpop.f32.mrb[0].mxu0
    %v391 = vadd.f32 %v94, %v390
    %v392 = vpop.f32.mrb[0].mxu0
    %393 = vmatprep.mubr.f32.mxu0 0.0
    %394 = vmatmul.mubr.f32.gmra.mrb[0].mxu0 %v122
    %v395 = vpop.f32.mrb[0].mxu0
    %v396 = vadd.f32 %v94, %v395
    %v397 = vpop.f32.mrb[0].mxu0
    %398 = vmatprep.mubr.f32.mxu0 0.0
    %399 = vmatmul.mubr.f32.gmra.mrb[0].mxu0 %v125
    %v400 = vpop.f32.mrb[0].mxu0
    %v401 = vadd.f32 %v94, %v400
    %v402 = vpop.f32.mrb[0].mxu0
    %403 = vmatprep.mubr.f32.mxu0 0.0
    %404 = vmatmul.mubr.f32.gmra.mrb[0].mxu0 %v128
    %v405 = vpop.f32.mrb[0].mxu0
    %v406 = vadd.f32 %v94, %v405
    %v407 = vpop.f32.mrb[0].mxu0
    %408 = vmatprep.mubr.f32.mxu0 0.0
    %409 = vmatmul.mubr.f32.gmra.mrb[0].mxu0 %v131
    %v410 = vpop.f32.mrb[0].mxu0
    %v411 = vadd.f32 %v94, %v410
    %v412 = vpop.f32.mrb[0].mxu0
    %413 = vmatprep.mubr.f32.mxu0 0.0
    %414 = vmatmul.mubr.f32.gmra.mrb[0].mxu0 %v134
    %v415 = vpop.f32.mrb[0].mxu0
    %v416 = vadd.f32 %v94, %v415
    %v417 = vpop.f32.mrb[0].mxu0
    %418 = vmatprep.mubr.f32.mxu0 0.0
    %419 = vmatmul.mubr.f32.gmra.mrb[0].mxu0 %v137
    %v420 = vpop.f32.mrb[0].mxu0
    %v421 = vadd.f32 %v94, %v420
    %v422 = vpop.f32.mrb[0].mxu0
    %423 = vmatprep.mubr.f32.mxu0 0.0
    %424 = vmatmul.mubr.f32.gmra.mrb[0].mxu0 %v140
    %v425 = vpop.f32.mrb[0].mxu0
    %v426 = vadd.f32 %v94, %v425
    %v427 = vpop.f32.mrb[0].mxu0
    %428 = vmatprep.mubr.f32.mxu0 0.0
    %429 = vmatmul.mubr.f32.gmra.mrb[0].mxu0 %v143
    %v430 = vpop.f32.mrb[0].mxu0
    %v431 = vadd.f32 %v94, %v430
    %v432 = vpop.f32.mrb[0].mxu0
    %433 = vmatprep.mubr.f32.mxu0 0.0
    %434 = vmatmul.mubr.f32.gmra.mrb[0].mxu0 %v146
    %v435 = vpop.f32.mrb[0].mxu0
    %v436 = vadd.f32 %v94, %v435
    %v437 = vpop.f32.mrb[0].mxu0
    %438 = vmatprep.mubr.f32.mxu0 0.0
    %439 = vmatmul.mubr.f32.gmra.mrb[0].mxu0 %v149
    %v440 = vpop.f32.mrb[0].mxu0
    %v441 = vadd.f32 %v94, %v440
    %v442 = vpop.f32.mrb[0].mxu0
    %443 = vmatprep.mubr.f32.mxu0 0.0
    %444 = vmatmul.mubr.f32.gmra.mrb[0].mxu0 %v152
    %v445 = vpop.f32.mrb[0].mxu0
    %v446 = vadd.f32 %v94, %v445
    %v447 = vpop.f32.mrb[0].mxu0
    %448 = vmatprep.mubr.f32.mxu0 0.0
    %449 = vmatmul.mubr.f32.gmra.mrb[0].mxu0 %v155
    %v450 = vpop.f32.mrb[0].mxu0
    %v451 = vadd.f32 %v94, %v450
    %v452 = vpop.f32.mrb[0].mxu0
    %453 = vmatprep.mubr.f32.mxu0 0.0
    %454 = vmatmul.mubr.f32.gmra.mrb[0].mxu0 %v158
    %v455 = vpop.f32.mrb[0].mxu0
    %v456 = vadd.f32 %v94, %v455
    %v457 = vpop.f32.mrb[0].mxu0
    %458 = vmatprep.mubr.f32.mxu0 0.0
    %459 = vmatmul.mubr.f32.gmra.mrb[0].mxu0 %v161
    %v460 = vpop.f32.mrb[0].mxu0
    %v461 = vadd.f32 %v94, %v460
    %v462 = vpop.f32.mrb[0].mxu0
    %463 = vmatprep.mubr.f32.mxu0 0.0
    %464 = vmatmul.mubr.f32.gmra.mrb[0].mxu0 %v164
    %v465 = vpop.f32.mrb[0].mxu0
    %v466 = vadd.f32 %v94, %v465
    %v467 = vpop.f32.mrb[0].mxu0
    %468 = vmatprep.mubr.f32.mxu0 0.0
    %469 = vmatmul.mubr.f32.gmra.mrb[0].mxu0 %v167
    %v470 = vpop.f32.mrb[0].mxu0
    %v471 = vadd.f32 %v94, %v470
    %v472 = vpop.f32.mrb[0].mxu0
    %473 = vmatprep.mubr.f32.mxu0 0.0
    %474 = vmatmul.mubr.f32.gmra.mrb[0].mxu0 %v170
    %v475 = vpop.f32.mrb[0].mxu0
    %v476 = vadd.f32 %v94, %v475
    %v477 = vpop.f32.mrb[0].mxu0
    %478 = vmatprep.mubr.f32.mxu0 0.0
    %479 = vmatmul.mubr.f32.gmra.mrb[0].mxu0 %v173
    %v480 = vpop.f32.mrb[0].mxu0
    %v481 = vadd.f32 %v94, %v480
    %v482 = vpop.f32.mrb[0].mxu0
    %483 = vmatprep.mubr.f32.mxu0 0.0
    %484 = vmatmul.mubr.f32.gmra.mrb[0].mxu0 %v176
    %v485 = vpop.f32.mrb[0].mxu0
    %v486 = vadd.f32 %v94, %v485
    %v487 = vpop.f32.mrb[0].mxu0
    %488 = vmatprep.mubr.f32.mxu0 0.0
    %489 = vmatmul.mubr.f32.gmra.mrb[0].mxu0 %v179
    %v490 = vpop.f32.mrb[0].mxu0
    %v491 = vadd.f32 %v94, %v490
    %v492 = vpop.f32.mrb[0].mxu0
    %493 = vmatprep.mubr.f32.mxu0 0.0
    %494 = vmatmul.mubr.f32.gmra.mrb[0].mxu0 %v182
    %v495 = vpop.f32.mrb[0].mxu0
    %v496 = vadd.f32 %v94, %v495
    %v497 = vpop.f32.mrb[0].mxu0
    %498 = vmatprep.mubr.f32.mxu0 0.0
    %499 = vmatmul.mubr.f32.gmra.mrb[0].mxu0 %v185
    %v500 = vpop.f32.mrb[0].mxu0
    %v501 = vadd.f32 %v94, %v500
    %v502 = vpop.f32.mrb[0].mxu0
    %503 = vmatprep.mubr.f32.mxu0 0.0
    %504 = vmatmul.mubr.f32.gmra.mrb[0].mxu0 %v188
    %v505 = vpop.f32.mrb[0].mxu0
    %v506 = vadd.f32 %v94, %v505
    %v507 = vpop.f32.mrb[0].mxu0
    %508 = vmatprep.mubr.f32.mxu0 0.0
    %509 = vmatmul.mubr.f32.gmra.mrb[0].mxu0 %v191
    %v510 = vpop.f32.mrb[0].mxu0
    %v511 = vadd.f32 %v94, %v510
    %v512 = vpop.f32.mrb[0].mxu0
    %513 = vmatprep.mubr.f32.mxu0 0.0
    %514 = vmatmul.mubr.f32.gmra.mrb[0].mxu0 %v194
    %v515 = vpop.f32.mrb[0].mxu0
    %v516 = vadd.f32 %v94, %v515
    %v517 = vpop.f32.mrb[0].mxu0
    %518 = vmatprep.mubr.f32.mxu0 0.0
    %519 = vmatmul.mubr.f32.gmra.mrb[0].mxu0 %v197
    %v520 = vpop.f32.mrb[0].mxu0
    %v521 = vadd.f32 %v94, %v520
    %v522 = vpop.f32.mrb[0].mxu0
    %523 = vmatprep.mubr.f32.mxu0 0.0
    %524 = vmatmul.mubr.f32.gmra.mrb[0].mxu0 %v200
    %v525 = vpop.f32.mrb[0].mxu0
    %v526 = vadd.f32 %v94, %v525
    %v527 = vpop.f32.mrb[0].mxu0
    %528 = vmatprep.mubr.f32.mxu0 0.0
    %529 = vmatmul.mubr.f32.gmra.mrb[0].mxu0 %v203
    %v530 = vpop.f32.mrb[0].mxu0
    %v531 = vadd.f32 %v94, %v530
    %v532 = vpop.f32.mrb[0].mxu0
    %533 = vmatprep.mubr.f32.mxu0 0.0
    %534 = vmatmul.mubr.f32.gmra.mrb[0].mxu0 %v206
    %v535 = vpop.f32.mrb[0].mxu0
    %v536 = vadd.f32 %v94, %v535
    %v537 = vpop.f32.mrb[0].mxu0
    %538 = vmatprep.mubr.f32.mxu0 0.0
    %539 = vmatmul.mubr.f32.gmra.mrb[0].mxu0 %v209
    %v540 = vpop.f32.mrb[0].mxu0
    %v541 = vadd.f32 %v94, %v540
    %v542 = vpop.f32.mrb[0].mxu0
    %543 = vmatprep.mubr.f32.mxu0 0.0
    %544 = vmatmul.mubr.f32.gmra.mrb[0].mxu0 %v212
    %v545 = vpop.f32.mrb[0].mxu0
    %v546 = vadd.f32 %v94, %v545
    %v547 = vpop.f32.mrb[0].mxu0
    %548 = vmatprep.mubr.f32.mxu0 0.0
    %549 = vmatmul.mubr.f32.gmra.mrb[0].mxu0 %v215
    %v550 = vpop.f32.mrb[0].mxu0
    %v551 = vadd.f32 %v94, %v550
    %v552 = vpop.f32.mrb[0].mxu0
    %553 = vmatprep.mubr.f32.mxu0 0.0
    %554 = vmatmul.mubr.f32.gmra.mrb[0].mxu0 %v218
    %v555 = vpop.f32.mrb[0].mxu0
    %v556 = vadd.f32 %v94, %v555
    %v557 = vpop.f32.mrb[0].mxu0
    %558 = vmatprep.mubr.f32.mxu0 0.0
    %559 = vmatmul.mubr.f32.gmra.mrb[0].mxu0 %v221
    %v560 = vpop.f32.mrb[0].mxu0
    %v561 = vadd.f32 %v94, %v560
    %v562 = vpop.f32.mrb[0].mxu0
    %563 = vmatprep.mubr.f32.mxu0 0.0
    %564 = vmatmul.mubr.f32.gmra.mrb[0].mxu0 %v224
    %v565 = vpop.f32.mrb[0].mxu0
    %v566 = vadd.f32 %v94, %v565
    %v567 = vpop.f32.mrb[0].mxu0
    %568 = vmatprep.mubr.f32.mxu0 0.0
    %569 = vmatmul.mubr.f32.gmra.mrb[0].mxu0 %v227
    %v570 = vpop.f32.mrb[0].mxu0
    %v571 = vadd.f32 %v94, %v570
    %v572 = vpop.f32.mrb[0].mxu0
    %573 = vmatprep.mubr.f32.mxu0 0.0
    %574 = vmatmul.mubr.f32.gmra.mrb[0].mxu0 %v230
    %v575 = vpop.f32.mrb[0].mxu0
    %v576 = vadd.f32 %v94, %v575
    %v577 = vpop.f32.mrb[0].mxu0
    %578 = vmatprep.mubr.f32.mxu0 0.0
    %579 = vmatmul.mubr.f32.gmra.mrb[0].mxu0 %v233
    %v580 = vpop.f32.mrb[0].mxu0
    %v581 = vadd.f32 %v94, %v580
    %v582 = vpop.f32.mrb[0].mxu0
    %583 = vmatprep.mubr.f32.mxu0 0.0
    %584 = vmatmul.mubr.f32.gmra.mrb[0].mxu0 %v236
    %v585 = vpop.f32.mrb[0].mxu0
    %v586 = vadd.f32 %v94, %v585
    %v587 = vpop.f32.mrb[0].mxu0
    %588 = vmatprep.mubr.f32.mxu0 0.0
    %589 = vmatmul.mubr.f32.gmra.mrb[0].mxu0 %v239
    %v590 = vpop.f32.mrb[0].mxu0
    %v591 = vadd.f32 %v94, %v590
    %v592 = vpop.f32.mrb[0].mxu0
    %593 = vmatprep.mubr.f32.mxu0 0.0
    %594 = vmatmul.mubr.f32.gmra.mrb[0].mxu0 %v242
    %v595 = vpop.f32.mrb[0].mxu0
    %v596 = vadd.f32 %v94, %v595
    %v597 = vpop.f32.mrb[0].mxu0
    %598 = vmatprep.mubr.f32.mxu0 0.0
    %599 = vmatmul.mubr.f32.gmra.mrb[0].mxu0 %v245
    %v600 = vpop.f32.mrb[0].mxu0
    %v601 = vadd.f32 %v94, %v600
    %v602 = vpop.f32.mrb[0].mxu0
    %603 = vmatprep.mubr.f32.mxu0 0.0
    %604 = vmatmul.mubr.f32.gmra.mrb[0].mxu0 %v248
    %v605 = vpop.f32.mrb[0].mxu0
    %v606 = vadd.f32 %v94, %v605
    %v607 = vpop.f32.mrb[0].mxu0
    %608 = vmatprep.mubr.f32.mxu0 0.0
    %609 = vmatmul.mubr.f32.gmra.mrb[0].mxu0 %v251
    %v610 = vpop.f32.mrb[0].mxu0
    %v611 = vadd.f32 %v94, %v610
    %v612 = vpop.f32.mrb[0].mxu0
    %613 = vmatprep.mubr.f32.mxu0 0.0
    %614 = vmatmul.mubr.f32.gmra.mrb[0].mxu0 %v254
    %v615 = vpop.f32.mrb[0].mxu0
    %v616 = vadd.f32 %v94, %v615
    %v617 = vpop.f32.mrb[0].mxu0
    %618 = vmatprep.mubr.f32.mxu0 0.0
    %619 = vmatmul.mubr.f32.gmra.mrb[0].mxu0 %v257
    %v620 = vpop.f32.mrb[0].mxu0
    %v621 = vadd.f32 %v94, %v620
    %v622 = vpop.f32.mrb[0].mxu0
    %623 = vmatprep.mubr.f32.mxu0 0.0
    %624 = vmatmul.mubr.f32.gmra.mrb[0].mxu0 %v260
    %v625 = vpop.f32.mrb[0].mxu0
    %v626 = vadd.f32 %v94, %v625
    %v627 = vpop.f32.mrb[0].mxu0
    %628 = vmatprep.mubr.f32.mxu0 0.0
    %629 = vmatmul.mubr.f32.gmra.mrb[0].mxu0 %v263
    %v630 = vpop.f32.mrb[0].mxu0
    %v631 = vadd.f32 %v94, %v630
    %v632 = vpop.f32.mrb[0].mxu0
    %633 = vmatprep.mubr.f32.mxu0 0.0
    %634 = vmatmul.mubr.f32.gmra.mrb[0].mxu0 %v266
    %v635 = vpop.f32.mrb[0].mxu0
    %v636 = vadd.f32 %v94, %v635
    %v637 = vpop.f32.mrb[0].mxu0
    %638 = vmatprep.mubr.f32.mxu0 0.0
    %639 = vmatmul.mubr.f32.gmra.mrb[0].mxu0 %v269
    %v640 = vpop.f32.mrb[0].mxu0
    %v641 = vadd.f32 %v94, %v640
    %v642 = vpop.f32.mrb[0].mxu0
    %643 = vmatprep.mubr.f32.mxu0 0.0
    %644 = vmatmul.mubr.f32.gmra.mrb[0].mxu0 %v272
    %v645 = vpop.f32.mrb[0].mxu0
    %v646 = vadd.f32 %v94, %v645
    %v647 = vpop.f32.mrb[0].mxu0
    %648 = vmatprep.mubr.f32.mxu0 0.0
    %649 = vmatmul.mubr.f32.gmra.mrb[0].mxu0 %v275
    %v650 = vpop.f32.mrb[0].mxu0
    %v651 = vadd.f32 %v94, %v650
    %v652 = vpop.f32.mrb[0].mxu0
    %653 = vmatprep.mubr.f32.mxu0 0.0
    %654 = vmatmul.mubr.f32.gmra.mrb[0].mxu0 %v278
    %v655 = vpop.f32.mrb[0].mxu0
    %v656 = vadd.f32 %v94, %v655
    %v657 = vpop.f32.mrb[0].mxu0
    %658 = vmatprep.mubr.f32.mxu0 0.0
    %659 = vmatmul.mubr.f32.gmra.mrb[0].mxu0 %v281
    %v660 = vpop.f32.mrb[0].mxu0
    %v661 = vadd.f32 %v94, %v660
    %v662 = vpop.f32.mrb[0].mxu0
    %663 = vmatprep.mubr.f32.mxu0 0.0
    %664 = vmatmul.mubr.f32.gmra.mrb[0].mxu0 %v284
    %v665 = vpop.f32.mrb[0].mxu0
    %v666 = vadd.f32 %v94, %v665
    %v667 = vpop.f32.mrb[0].mxu0
    %668 = vmatprep.mubr.f32.mxu0 0.0
    %669 = vmatmul.mubr.f32.gmra.mrb[0].mxu0 %v287
    %v670 = vpop.f32.mrb[0].mxu0
    %v671 = vadd.f32 %v94, %v670
    %v672 = vpop.f32.mrb[0].mxu0
    %673 = vdwg.mxu0
    %v674 = vmax.f32 %v356, 0.0
    %v675 = vmax.f32 %v361, 0.0
    %v676 = vmax.f32 %v366, 0.0
    %v677 = vmax.f32 %v371, 0.0
    %v678 = vmax.f32 %v376, 0.0
    %v679 = vmax.f32 %v381, 0.0
    %v680 = vmax.f32 %v386, 0.0
    %v681 = vmax.f32 %v391, 0.0
    %v682 = vmax.f32 %v396, 0.0
    %v683 = vmax.f32 %v401, 0.0
    %v684 = vmax.f32 %v406, 0.0
    %v685 = vmax.f32 %v411, 0.0
    %v686 = vmax.f32 %v416, 0.0
    %v687 = vmax.f32 %v421, 0.0
    %v688 = vmax.f32 %v426, 0.0
    %v689 = vmax.f32 %v431, 0.0
    %v690 = vmax.f32 %v436, 0.0
    %v691 = vmax.f32 %v441, 0.0
    %v692 = vmax.f32 %v446, 0.0
    %v693 = vmax.f32 %v451, 0.0
    %v694 = vmax.f32 %v456, 0.0
    %v695 = vmax.f32 %v461, 0.0
    %v696 = vmax.f32 %v466, 0.0
    %v697 = vmax.f32 %v471, 0.0
    %v698 = vmax.f32 %v476, 0.0
    %v699 = vmax.f32 %v481, 0.0
    %v700 = vmax.f32 %v486, 0.0
    %v701 = vmax.f32 %v491, 0.0
    %v702 = vmax.f32 %v496, 0.0
    %v703 = vmax.f32 %v501, 0.0
    %v704 = vmax.f32 %v506, 0.0
    %v705 = vmax.f32 %v511, 0.0
    %v706 = vmax.f32 %v516, 0.0
    %v707 = vmax.f32 %v521, 0.0
    %v708 = vmax.f32 %v526, 0.0
    %v709 = vmax.f32 %v531, 0.0
    %v710 = vmax.f32 %v536, 0.0
    %v711 = vmax.f32 %v541, 0.0
    %v712 = vmax.f32 %v546, 0.0
    %v713 = vmax.f32 %v551, 0.0
    %v714 = vmax.f32 %v556, 0.0
    %v715 = vmax.f32 %v561, 0.0
    %v716 = vmax.f32 %v566, 0.0
    %v717 = vmax.f32 %v571, 0.0
    %v718 = vmax.f32 %v576, 0.0
    %v719 = vmax.f32 %v581, 0.0
    %v720 = vmax.f32 %v586, 0.0
    %v721 = vmax.f32 %v591, 0.0
    %v722 = vmax.f32 %v596, 0.0
    %v723 = vmax.f32 %v601, 0.0
    %v724 = vmax.f32 %v606, 0.0
    %v725 = vmax.f32 %v611, 0.0
    %v726 = vmax.f32 %v616, 0.0
    %v727 = vmax.f32 %v621, 0.0
    %v728 = vmax.f32 %v626, 0.0
    %v729 = vmax.f32 %v631, 0.0
    %v730 = vmax.f32 %v636, 0.0
    %v731 = vmax.f32 %v641, 0.0
    %v732 = vmax.f32 %v646, 0.0
    %v733 = vmax.f32 %v651, 0.0
    %v734 = vmax.f32 %v656, 0.0
    %v735 = vmax.f32 %v661, 0.0
    %v736 = vmax.f32 %v666, 0.0
    %v737 = vmax.f32 %v671, 0.0
    %v738 = vld [vmem:[%s2] sm:$0xff]
    %v739 = vld [vmem:[%s2 + $0x8] sm:$0xff]
    %v740 = vld [vmem:[%s2 + $0x10] sm:$0xff]
    %v741 = vld [vmem:[%s2 + $0x18] sm:$0xff]
    %v742 = vld [vmem:[%s2 + $0x20] sm:$0xff]
    %v743 = vld [vmem:[%s2 + $0x28] sm:$0xff]
    %v744 = vld [vmem:[%s2 + $0x30] sm:$0xff]
    %v745 = vld [vmem:[%s2 + $0x38] sm:$0xff]
    %s746 = scalar_lea.vmem %s3, 1
    %v747 = vld [vmem:[%s746] sm:$0x1]
    %v749 = vlaneseq
    %v750 = vshrl.u32 %v749, 7
    %v751 = vsub.s32 0, %v750
    %v752 = vrot.slane %v747, %v751
    %vm754 = vcmask 523264
    %v756 = vsel %vm754, %v674, 0
    %v759 = vsel %vm754, %v675, 0
    %v762 = vsel %vm754, %v676, 0
    %v765 = vsel %vm754, %v677, 0
    %v768 = vsel %vm754, %v678, 0
    %v771 = vsel %vm754, %v679, 0
    %v774 = vsel %vm754, %v680, 0
    %v777 = vsel %vm754, %v681, 0
    %v780 = vsel %vm754, %v682, 0
    %v783 = vsel %vm754, %v683, 0
    %v786 = vsel %vm754, %v684, 0
    %v789 = vsel %vm754, %v685, 0
    %v792 = vsel %vm754, %v686, 0
    %v795 = vsel %vm754, %v687, 0
    %v798 = vsel %vm754, %v688, 0
    %v801 = vsel %vm754, %v689, 0
    %v804 = vsel %vm754, %v690, 0
    %v807 = vsel %vm754, %v691, 0
    %v810 = vsel %vm754, %v692, 0
    %v813 = vsel %vm754, %v693, 0
    %v816 = vsel %vm754, %v694, 0
    %v819 = vsel %vm754, %v695, 0
    %v822 = vsel %vm754, %v696, 0
    %v825 = vsel %vm754, %v697, 0
    %v828 = vsel %vm754, %v698, 0
    %v831 = vsel %vm754, %v699, 0
    %v834 = vsel %vm754, %v700, 0
    %v837 = vsel %vm754, %v701, 0
    %v840 = vsel %vm754, %v702, 0
    %v843 = vsel %vm754, %v703, 0
    %v846 = vsel %vm754, %v704, 0
    %v849 = vsel %vm754, %v705, 0
    %v852 = vsel %vm754, %v706, 0
    %v855 = vsel %vm754, %v707, 0
    %v858 = vsel %vm754, %v708, 0
    %v861 = vsel %vm754, %v709, 0
    %v864 = vsel %vm754, %v710, 0
    %v867 = vsel %vm754, %v711, 0
    %v870 = vsel %vm754, %v712, 0
    %v873 = vsel %vm754, %v713, 0
    %v876 = vsel %vm754, %v714, 0
    %v879 = vsel %vm754, %v715, 0
    %v882 = vsel %vm754, %v716, 0
    %v885 = vsel %vm754, %v717, 0
    %v888 = vsel %vm754, %v718, 0
    %v891 = vsel %vm754, %v719, 0
    %v894 = vsel %vm754, %v720, 0
    %v897 = vsel %vm754, %v721, 0
    %v900 = vsel %vm754, %v722, 0
    %v903 = vsel %vm754, %v723, 0
    %v906 = vsel %vm754, %v724, 0
    %v909 = vsel %vm754, %v725, 0
    %v912 = vsel %vm754, %v726, 0
    %v915 = vsel %vm754, %v727, 0
    %v918 = vsel %vm754, %v728, 0
    %v921 = vsel %vm754, %v729, 0
    %v924 = vsel %vm754, %v730, 0
    %v927 = vsel %vm754, %v731, 0
    %v930 = vsel %vm754, %v732, 0
    %v933 = vsel %vm754, %v733, 0
    %v936 = vsel %vm754, %v734, 0
    %v939 = vsel %vm754, %v735, 0
    %v942 = vsel %vm754, %v736, 0
    %v945 = vsel %vm754, %v737, 0
    %947 = vmatprep.subr.mxu0 0.0
    %948 = vmatpush1.msra.mxu0 %v738
    %949 = vmatprep.subr.mxu0 0.0
    %950 = vmatpush1.msra.mxu0 %v739
    %951 = vmatprep.subr.mxu0 0.0
    %952 = vmatpush1.msra.mxu0 %v740
    %953 = vmatprep.subr.mxu0 0.0
    %954 = vmatpush1.msra.mxu0 %v741
    %955 = vmatprep.subr.mxu0 0.0
    %956 = vmatpush1.msra.mxu0 %v742
    %957 = vmatprep.subr.mxu0 0.0
    %958 = vmatpush1.msra.mxu0 %v743
    %959 = vmatprep.subr.mxu0 0.0
    %960 = vmatpush1.msra.mxu0 %v744
    %961 = vmatprep.subr.mxu0 0.0
    %962 = vmatpush1.msra.mxu0 %v745
    %963 = vmatprep.subr.mxu0 0.0
    %964 = vmatpush1.msra.mxu0 0.0
    %965 = vmatprep.subr.mxu0 0.0
    %966 = vmatpush1.msra.mxu0 0.0
    %967 = vmatprep.subr.mxu0 0.0
    %968 = vmatpush1.msra.mxu0 0.0
    %969 = vmatprep.subr.mxu0 0.0
    %970 = vmatpush1.msra.mxu0 0.0
    %971 = vmatprep.subr.mxu0 0.0
    %972 = vmatpush1.msra.mxu0 0.0
    %973 = vmatprep.subr.mxu0 0.0
    %974 = vmatpush1.msra.mxu0 0.0
    %975 = vmatprep.subr.mxu0 0.0
    %976 = vmatpush1.msra.mxu0 0.0
    %977 = vmatprep.subr.mxu0 0.0
    %978 = vmatpush1.msra.mxu0 0.0
    %979 = vmatprep.subr.mxu0 0.0
    %980 = vmatpush1.msra.mxu0 0.0
    %981 = vmatprep.subr.mxu0 0.0
    %982 = vmatpush1.msra.mxu0 0.0
    %983 = vmatprep.subr.mxu0 0.0
    %984 = vmatpush1.msra.mxu0 0.0
    %985 = vmatprep.subr.mxu0 0.0
    %986 = vmatpush1.msra.mxu0 0.0
    %987 = vmatprep.subr.mxu0 0.0
    %988 = vmatpush1.msra.mxu0 0.0
    %989 = vmatprep.subr.mxu0 0.0
    %990 = vmatpush1.msra.mxu0 0.0
    %991 = vmatprep.subr.mxu0 0.0
    %992 = vmatpush1.msra.mxu0 0.0
    %993 = vmatprep.subr.mxu0 0.0
    %994 = vmatpush1.msra.mxu0 0.0
    %995 = vmatprep.subr.mxu0 0.0
    %996 = vmatpush1.msra.mxu0 0.0
    %997 = vmatprep.subr.mxu0 0.0
    %998 = vmatpush1.msra.mxu0 0.0
    %999 = vmatprep.subr.mxu0 0.0
    %1000 = vmatpush1.msra.mxu0 0.0
    %1001 = vmatprep.subr.mxu0 0.0
    %1002 = vmatpush1.msra.mxu0 0.0
    %1003 = vmatprep.subr.mxu0 0.0
    %1004 = vmatpush1.msra.mxu0 0.0
    %1005 = vmatprep.subr.mxu0 0.0
    %1006 = vmatpush1.msra.mxu0 0.0
    %1007 = vmatprep.subr.mxu0 0.0
    %1008 = vmatpush1.msra.mxu0 0.0
    %1009 = vmatprep.subr.mxu0 0.0
    %1010 = vmatpush1.msra.mxu0 0.0
    %1011 = vmatprep.mubr.f32.mxu0 0.0
    %1012 = vmatmul.mubr.f32.gmra.mrb[0].mxu0 %v756
    %v1013 = vpop.f32.mrb[0].mxu0
    %v1014 = vadd.f32 %v752, %v1013
    %v1015 = vpop.f32.mrb[0].mxu0
    %1016 = vmatprep.mubr.f32.mxu0 0.0
    %1017 = vmatmul.mubr.f32.gmra.mrb[0].mxu0 %v759
    %v1018 = vpop.f32.mrb[0].mxu0
    %v1019 = vadd.f32 %v752, %v1018
    %v1020 = vpop.f32.mrb[0].mxu0
    %1021 = vmatprep.mubr.f32.mxu0 0.0
    %1022 = vmatmul.mubr.f32.gmra.mrb[0].mxu0 %v762
    %v1023 = vpop.f32.mrb[0].mxu0
    %v1024 = vadd.f32 %v752, %v1023
    %v1025 = vpop.f32.mrb[0].mxu0
    %1026 = vmatprep.mubr.f32.mxu0 0.0
    %1027 = vmatmul.mubr.f32.gmra.mrb[0].mxu0 %v765
    %v1028 = vpop.f32.mrb[0].mxu0
    %v1029 = vadd.f32 %v752, %v1028
    %v1030 = vpop.f32.mrb[0].mxu0
    %1031 = vmatprep.mubr.f32.mxu0 0.0
    %1032 = vmatmul.mubr.f32.gmra.mrb[0].mxu0 %v768
    %v1033 = vpop.f32.mrb[0].mxu0
    %v1034 = vadd.f32 %v752, %v1033
    %v1035 = vpop.f32.mrb[0].mxu0
    %1036 = vmatprep.mubr.f32.mxu0 0.0
    %1037 = vmatmul.mubr.f32.gmra.mrb[0].mxu0 %v771
    %v1038 = vpop.f32.mrb[0].mxu0
    %v1039 = vadd.f32 %v752, %v1038
    %v1040 = vpop.f32.mrb[0].mxu0
    %1041 = vmatprep.mubr.f32.mxu0 0.0
    %1042 = vmatmul.mubr.f32.gmra.mrb[0].mxu0 %v774
    %v1043 = vpop.f32.mrb[0].mxu0
    %v1044 = vadd.f32 %v752, %v1043
    %v1045 = vpop.f32.mrb[0].mxu0
    %1046 = vmatprep.mubr.f32.mxu0 0.0
    %1047 = vmatmul.mubr.f32.gmra.mrb[0].mxu0 %v777
    %v1048 = vpop.f32.mrb[0].mxu0
    %v1049 = vadd.f32 %v752, %v1048
    %v1050 = vpop.f32.mrb[0].mxu0
    %1051 = vmatprep.mubr.f32.mxu0 0.0
    %1052 = vmatmul.mubr.f32.gmra.mrb[0].mxu0 %v780
    %v1053 = vpop.f32.mrb[0].mxu0
    %v1054 = vadd.f32 %v752, %v1053
    %v1055 = vpop.f32.mrb[0].mxu0
    %1056 = vmatprep.mubr.f32.mxu0 0.0
    %1057 = vmatmul.mubr.f32.gmra.mrb[0].mxu0 %v783
    %v1058 = vpop.f32.mrb[0].mxu0
    %v1059 = vadd.f32 %v752, %v1058
    %v1060 = vpop.f32.mrb[0].mxu0
    %1061 = vmatprep.mubr.f32.mxu0 0.0
    %1062 = vmatmul.mubr.f32.gmra.mrb[0].mxu0 %v786
    %v1063 = vpop.f32.mrb[0].mxu0
    %v1064 = vadd.f32 %v752, %v1063
    %v1065 = vpop.f32.mrb[0].mxu0
    %1066 = vmatprep.mubr.f32.mxu0 0.0
    %1067 = vmatmul.mubr.f32.gmra.mrb[0].mxu0 %v789
    %v1068 = vpop.f32.mrb[0].mxu0
    %v1069 = vadd.f32 %v752, %v1068
    %v1070 = vpop.f32.mrb[0].mxu0
    %1071 = vmatprep.mubr.f32.mxu0 0.0
    %1072 = vmatmul.mubr.f32.gmra.mrb[0].mxu0 %v792
    %v1073 = vpop.f32.mrb[0].mxu0
    %v1074 = vadd.f32 %v752, %v1073
    %v1075 = vpop.f32.mrb[0].mxu0
    %1076 = vmatprep.mubr.f32.mxu0 0.0
    %1077 = vmatmul.mubr.f32.gmra.mrb[0].mxu0 %v795
    %v1078 = vpop.f32.mrb[0].mxu0
    %v1079 = vadd.f32 %v752, %v1078
    %v1080 = vpop.f32.mrb[0].mxu0
    %1081 = vmatprep.mubr.f32.mxu0 0.0
    %1082 = vmatmul.mubr.f32.gmra.mrb[0].mxu0 %v798
    %v1083 = vpop.f32.mrb[0].mxu0
    %v1084 = vadd.f32 %v752, %v1083
    %v1085 = vpop.f32.mrb[0].mxu0
    %1086 = vmatprep.mubr.f32.mxu0 0.0
    %1087 = vmatmul.mubr.f32.gmra.mrb[0].mxu0 %v801
    %v1088 = vpop.f32.mrb[0].mxu0
    %v1089 = vadd.f32 %v752, %v1088
    %v1090 = vpop.f32.mrb[0].mxu0
    %1091 = vmatprep.mubr.f32.mxu0 0.0
    %1092 = vmatmul.mubr.f32.gmra.mrb[0].mxu0 %v804
    %v1093 = vpop.f32.mrb[0].mxu0
    %v1094 = vadd.f32 %v752, %v1093
    %v1095 = vpop.f32.mrb[0].mxu0
    %1096 = vmatprep.mubr.f32.mxu0 0.0
    %1097 = vmatmul.mubr.f32.gmra.mrb[0].mxu0 %v807
    %v1098 = vpop.f32.mrb[0].mxu0
    %v1099 = vadd.f32 %v752, %v1098
    %v1100 = vpop.f32.mrb[0].mxu0
    %1101 = vmatprep.mubr.f32.mxu0 0.0
    %1102 = vmatmul.mubr.f32.gmra.mrb[0].mxu0 %v810
    %v1103 = vpop.f32.mrb[0].mxu0
    %v1104 = vadd.f32 %v752, %v1103
    %v1105 = vpop.f32.mrb[0].mxu0
    %1106 = vmatprep.mubr.f32.mxu0 0.0
    %1107 = vmatmul.mubr.f32.gmra.mrb[0].mxu0 %v813
    %v1108 = vpop.f32.mrb[0].mxu0
    %v1109 = vadd.f32 %v752, %v1108
    %v1110 = vpop.f32.mrb[0].mxu0
    %1111 = vmatprep.mubr.f32.mxu0 0.0
    %1112 = vmatmul.mubr.f32.gmra.mrb[0].mxu0 %v816
    %v1113 = vpop.f32.mrb[0].mxu0
    %v1114 = vadd.f32 %v752, %v1113
    %v1115 = vpop.f32.mrb[0].mxu0
    %1116 = vmatprep.mubr.f32.mxu0 0.0
    %1117 = vmatmul.mubr.f32.gmra.mrb[0].mxu0 %v819
    %v1118 = vpop.f32.mrb[0].mxu0
    %v1119 = vadd.f32 %v752, %v1118
    %v1120 = vpop.f32.mrb[0].mxu0
    %1121 = vmatprep.mubr.f32.mxu0 0.0
    %1122 = vmatmul.mubr.f32.gmra.mrb[0].mxu0 %v822
    %v1123 = vpop.f32.mrb[0].mxu0
    %v1124 = vadd.f32 %v752, %v1123
    %v1125 = vpop.f32.mrb[0].mxu0
    %1126 = vmatprep.mubr.f32.mxu0 0.0
    %1127 = vmatmul.mubr.f32.gmra.mrb[0].mxu0 %v825
    %v1128 = vpop.f32.mrb[0].mxu0
    %v1129 = vadd.f32 %v752, %v1128
    %v1130 = vpop.f32.mrb[0].mxu0
    %1131 = vmatprep.mubr.f32.mxu0 0.0
    %1132 = vmatmul.mubr.f32.gmra.mrb[0].mxu0 %v828
    %v1133 = vpop.f32.mrb[0].mxu0
    %v1134 = vadd.f32 %v752, %v1133
    %v1135 = vpop.f32.mrb[0].mxu0
    %1136 = vmatprep.mubr.f32.mxu0 0.0
    %1137 = vmatmul.mubr.f32.gmra.mrb[0].mxu0 %v831
    %v1138 = vpop.f32.mrb[0].mxu0
    %v1139 = vadd.f32 %v752, %v1138
    %v1140 = vpop.f32.mrb[0].mxu0
    %1141 = vmatprep.mubr.f32.mxu0 0.0
    %1142 = vmatmul.mubr.f32.gmra.mrb[0].mxu0 %v834
    %v1143 = vpop.f32.mrb[0].mxu0
    %v1144 = vadd.f32 %v752, %v1143
    %v1145 = vpop.f32.mrb[0].mxu0
    %1146 = vmatprep.mubr.f32.mxu0 0.0
    %1147 = vmatmul.mubr.f32.gmra.mrb[0].mxu0 %v837
    %v1148 = vpop.f32.mrb[0].mxu0
    %v1149 = vadd.f32 %v752, %v1148
    %v1150 = vpop.f32.mrb[0].mxu0
    %1151 = vmatprep.mubr.f32.mxu0 0.0
    %1152 = vmatmul.mubr.f32.gmra.mrb[0].mxu0 %v840
    %v1153 = vpop.f32.mrb[0].mxu0
    %v1154 = vadd.f32 %v752, %v1153
    %v1155 = vpop.f32.mrb[0].mxu0
    %1156 = vmatprep.mubr.f32.mxu0 0.0
    %1157 = vmatmul.mubr.f32.gmra.mrb[0].mxu0 %v843
    %v1158 = vpop.f32.mrb[0].mxu0
    %v1159 = vadd.f32 %v752, %v1158
    %v1160 = vpop.f32.mrb[0].mxu0
    %1161 = vmatprep.mubr.f32.mxu0 0.0
    %1162 = vmatmul.mubr.f32.gmra.mrb[0].mxu0 %v846
    %v1163 = vpop.f32.mrb[0].mxu0
    %v1164 = vadd.f32 %v752, %v1163
    %v1165 = vpop.f32.mrb[0].mxu0
    %1166 = vmatprep.mubr.f32.mxu0 0.0
    %1167 = vmatmul.mubr.f32.gmra.mrb[0].mxu0 %v849
    %v1168 = vpop.f32.mrb[0].mxu0
    %v1169 = vadd.f32 %v752, %v1168
    %v1170 = vpop.f32.mrb[0].mxu0
    %1171 = vmatprep.mubr.f32.mxu0 0.0
    %1172 = vmatmul.mubr.f32.gmra.mrb[0].mxu0 %v852
    %v1173 = vpop.f32.mrb[0].mxu0
    %v1174 = vadd.f32 %v752, %v1173
    %v1175 = vpop.f32.mrb[0].mxu0
    %1176 = vmatprep.mubr.f32.mxu0 0.0
    %1177 = vmatmul.mubr.f32.gmra.mrb[0].mxu0 %v855
    %v1178 = vpop.f32.mrb[0].mxu0
    %v1179 = vadd.f32 %v752, %v1178
    %v1180 = vpop.f32.mrb[0].mxu0
    %1181 = vmatprep.mubr.f32.mxu0 0.0
    %1182 = vmatmul.mubr.f32.gmra.mrb[0].mxu0 %v858
    %v1183 = vpop.f32.mrb[0].mxu0
    %v1184 = vadd.f32 %v752, %v1183
    %v1185 = vpop.f32.mrb[0].mxu0
    %1186 = vmatprep.mubr.f32.mxu0 0.0
    %1187 = vmatmul.mubr.f32.gmra.mrb[0].mxu0 %v861
    %v1188 = vpop.f32.mrb[0].mxu0
    %v1189 = vadd.f32 %v752, %v1188
    %v1190 = vpop.f32.mrb[0].mxu0
    %1191 = vmatprep.mubr.f32.mxu0 0.0
    %1192 = vmatmul.mubr.f32.gmra.mrb[0].mxu0 %v864
    %v1193 = vpop.f32.mrb[0].mxu0
    %v1194 = vadd.f32 %v752, %v1193
    %v1195 = vpop.f32.mrb[0].mxu0
    %1196 = vmatprep.mubr.f32.mxu0 0.0
    %1197 = vmatmul.mubr.f32.gmra.mrb[0].mxu0 %v867
    %v1198 = vpop.f32.mrb[0].mxu0
    %v1199 = vadd.f32 %v752, %v1198
    %v1200 = vpop.f32.mrb[0].mxu0
    %1201 = vmatprep.mubr.f32.mxu0 0.0
    %1202 = vmatmul.mubr.f32.gmra.mrb[0].mxu0 %v870
    %v1203 = vpop.f32.mrb[0].mxu0
    %v1204 = vadd.f32 %v752, %v1203
    %v1205 = vpop.f32.mrb[0].mxu0
    %1206 = vmatprep.mubr.f32.mxu0 0.0
    %1207 = vmatmul.mubr.f32.gmra.mrb[0].mxu0 %v873
    %v1208 = vpop.f32.mrb[0].mxu0
    %v1209 = vadd.f32 %v752, %v1208
    %v1210 = vpop.f32.mrb[0].mxu0
    %1211 = vmatprep.mubr.f32.mxu0 0.0
    %1212 = vmatmul.mubr.f32.gmra.mrb[0].mxu0 %v876
    %v1213 = vpop.f32.mrb[0].mxu0
    %v1214 = vadd.f32 %v752, %v1213
    %v1215 = vpop.f32.mrb[0].mxu0
    %1216 = vmatprep.mubr.f32.mxu0 0.0
    %1217 = vmatmul.mubr.f32.gmra.mrb[0].mxu0 %v879
    %v1218 = vpop.f32.mrb[0].mxu0
    %v1219 = vadd.f32 %v752, %v1218
    %v1220 = vpop.f32.mrb[0].mxu0
    %1221 = vmatprep.mubr.f32.mxu0 0.0
    %1222 = vmatmul.mubr.f32.gmra.mrb[0].mxu0 %v882
    %v1223 = vpop.f32.mrb[0].mxu0
    %v1224 = vadd.f32 %v752, %v1223
    %v1225 = vpop.f32.mrb[0].mxu0
    %1226 = vmatprep.mubr.f32.mxu0 0.0
    %1227 = vmatmul.mubr.f32.gmra.mrb[0].mxu0 %v885
    %v1228 = vpop.f32.mrb[0].mxu0
    %v1229 = vadd.f32 %v752, %v1228
    %v1230 = vpop.f32.mrb[0].mxu0
    %1231 = vmatprep.mubr.f32.mxu0 0.0
    %1232 = vmatmul.mubr.f32.gmra.mrb[0].mxu0 %v888
    %v1233 = vpop.f32.mrb[0].mxu0
    %v1234 = vadd.f32 %v752, %v1233
    %v1235 = vpop.f32.mrb[0].mxu0
    %1236 = vmatprep.mubr.f32.mxu0 0.0
    %1237 = vmatmul.mubr.f32.gmra.mrb[0].mxu0 %v891
    %v1238 = vpop.f32.mrb[0].mxu0
    %v1239 = vadd.f32 %v752, %v1238
    %v1240 = vpop.f32.mrb[0].mxu0
    %1241 = vmatprep.mubr.f32.mxu0 0.0
    %1242 = vmatmul.mubr.f32.gmra.mrb[0].mxu0 %v894
    %v1243 = vpop.f32.mrb[0].mxu0
    %v1244 = vadd.f32 %v752, %v1243
    %v1245 = vpop.f32.mrb[0].mxu0
    %1246 = vmatprep.mubr.f32.mxu0 0.0
    %1247 = vmatmul.mubr.f32.gmra.mrb[0].mxu0 %v897
    %v1248 = vpop.f32.mrb[0].mxu0
    %v1249 = vadd.f32 %v752, %v1248
    %v1250 = vpop.f32.mrb[0].mxu0
    %1251 = vmatprep.mubr.f32.mxu0 0.0
    %1252 = vmatmul.mubr.f32.gmra.mrb[0].mxu0 %v900
    %v1253 = vpop.f32.mrb[0].mxu0
    %v1254 = vadd.f32 %v752, %v1253
    %v1255 = vpop.f32.mrb[0].mxu0
    %1256 = vmatprep.mubr.f32.mxu0 0.0
    %1257 = vmatmul.mubr.f32.gmra.mrb[0].mxu0 %v903
    %v1258 = vpop.f32.mrb[0].mxu0
    %v1259 = vadd.f32 %v752, %v1258
    %v1260 = vpop.f32.mrb[0].mxu0
    %1261 = vmatprep.mubr.f32.mxu0 0.0
    %1262 = vmatmul.mubr.f32.gmra.mrb[0].mxu0 %v906
    %v1263 = vpop.f32.mrb[0].mxu0
    %v1264 = vadd.f32 %v752, %v1263
    %v1265 = vpop.f32.mrb[0].mxu0
    %1266 = vmatprep.mubr.f32.mxu0 0.0
    %1267 = vmatmul.mubr.f32.gmra.mrb[0].mxu0 %v909
    %v1268 = vpop.f32.mrb[0].mxu0
    %v1269 = vadd.f32 %v752, %v1268
    %v1270 = vpop.f32.mrb[0].mxu0
    %1271 = vmatprep.mubr.f32.mxu0 0.0
    %1272 = vmatmul.mubr.f32.gmra.mrb[0].mxu0 %v912
    %v1273 = vpop.f32.mrb[0].mxu0
    %v1274 = vadd.f32 %v752, %v1273
    %v1275 = vpop.f32.mrb[0].mxu0
    %1276 = vmatprep.mubr.f32.mxu0 0.0
    %1277 = vmatmul.mubr.f32.gmra.mrb[0].mxu0 %v915
    %v1278 = vpop.f32.mrb[0].mxu0
    %v1279 = vadd.f32 %v752, %v1278
    %v1280 = vpop.f32.mrb[0].mxu0
    %1281 = vmatprep.mubr.f32.mxu0 0.0
    %1282 = vmatmul.mubr.f32.gmra.mrb[0].mxu0 %v918
    %v1283 = vpop.f32.mrb[0].mxu0
    %v1284 = vadd.f32 %v752, %v1283
    %v1285 = vpop.f32.mrb[0].mxu0
    %1286 = vmatprep.mubr.f32.mxu0 0.0
    %1287 = vmatmul.mubr.f32.gmra.mrb[0].mxu0 %v921
    %v1288 = vpop.f32.mrb[0].mxu0
    %v1289 = vadd.f32 %v752, %v1288
    %v1290 = vpop.f32.mrb[0].mxu0
    %1291 = vmatprep.mubr.f32.mxu0 0.0
    %1292 = vmatmul.mubr.f32.gmra.mrb[0].mxu0 %v924
    %v1293 = vpop.f32.mrb[0].mxu0
    %v1294 = vadd.f32 %v752, %v1293
    %v1295 = vpop.f32.mrb[0].mxu0
    %1296 = vmatprep.mubr.f32.mxu0 0.0
    %1297 = vmatmul.mubr.f32.gmra.mrb[0].mxu0 %v927
    %v1298 = vpop.f32.mrb[0].mxu0
    %v1299 = vadd.f32 %v752, %v1298
    %v1300 = vpop.f32.mrb[0].mxu0
    %1301 = vmatprep.mubr.f32.mxu0 0.0
    %1302 = vmatmul.mubr.f32.gmra.mrb[0].mxu0 %v930
    %v1303 = vpop.f32.mrb[0].mxu0
    %v1304 = vadd.f32 %v752, %v1303
    %v1305 = vpop.f32.mrb[0].mxu0
    %1306 = vmatprep.mubr.f32.mxu0 0.0
    %1307 = vmatmul.mubr.f32.gmra.mrb[0].mxu0 %v933
    %v1308 = vpop.f32.mrb[0].mxu0
    %v1309 = vadd.f32 %v752, %v1308
    %v1310 = vpop.f32.mrb[0].mxu0
    %1311 = vmatprep.mubr.f32.mxu0 0.0
    %1312 = vmatmul.mubr.f32.gmra.mrb[0].mxu0 %v936
    %v1313 = vpop.f32.mrb[0].mxu0
    %v1314 = vadd.f32 %v752, %v1313
    %v1315 = vpop.f32.mrb[0].mxu0
    %1316 = vmatprep.mubr.f32.mxu0 0.0
    %1317 = vmatmul.mubr.f32.gmra.mrb[0].mxu0 %v939
    %v1318 = vpop.f32.mrb[0].mxu0
    %v1319 = vadd.f32 %v752, %v1318
    %v1320 = vpop.f32.mrb[0].mxu0
    %1321 = vmatprep.mubr.f32.mxu0 0.0
    %1322 = vmatmul.mubr.f32.gmra.mrb[0].mxu0 %v942
    %v1323 = vpop.f32.mrb[0].mxu0
    %v1324 = vadd.f32 %v752, %v1323
    %v1325 = vpop.f32.mrb[0].mxu0
    %1326 = vmatprep.mubr.f32.mxu0 0.0
    %1327 = vmatmul.mubr.f32.gmra.mrb[0].mxu0 %v945
    %v1328 = vpop.f32.mrb[0].mxu0
    %v1329 = vadd.f32 %v752, %v1328
    %v1330 = vpop.f32.mrb[0].mxu0
    %1331 = vdwg.mxu0
    %v1332 = vmax.f32 %v1014, 0.0
    %v1333 = vmax.f32 %v1019, 0.0
    %v1334 = vmax.f32 %v1024, 0.0
    %v1335 = vmax.f32 %v1029, 0.0
    %v1336 = vmax.f32 %v1034, 0.0
    %v1337 = vmax.f32 %v1039, 0.0
    %v1338 = vmax.f32 %v1044, 0.0
    %v1339 = vmax.f32 %v1049, 0.0
    %v1340 = vmax.f32 %v1054, 0.0
    %v1341 = vmax.f32 %v1059, 0.0
    %v1342 = vmax.f32 %v1064, 0.0
    %v1343 = vmax.f32 %v1069, 0.0
    %v1344 = vmax.f32 %v1074, 0.0
    %v1345 = vmax.f32 %v1079, 0.0
    %v1346 = vmax.f32 %v1084, 0.0
    %v1347 = vmax.f32 %v1089, 0.0
    %v1348 = vmax.f32 %v1094, 0.0
    %v1349 = vmax.f32 %v1099, 0.0
    %v1350 = vmax.f32 %v1104, 0.0
    %v1351 = vmax.f32 %v1109, 0.0
    %v1352 = vmax.f32 %v1114, 0.0
    %v1353 = vmax.f32 %v1119, 0.0
    %v1354 = vmax.f32 %v1124, 0.0
    %v1355 = vmax.f32 %v1129, 0.0
    %v1356 = vmax.f32 %v1134, 0.0
    %v1357 = vmax.f32 %v1139, 0.0
    %v1358 = vmax.f32 %v1144, 0.0
    %v1359 = vmax.f32 %v1149, 0.0
    %v1360 = vmax.f32 %v1154, 0.0
    %v1361 = vmax.f32 %v1159, 0.0
    %v1362 = vmax.f32 %v1164, 0.0
    %v1363 = vmax.f32 %v1169, 0.0
    %v1364 = vmax.f32 %v1174, 0.0
    %v1365 = vmax.f32 %v1179, 0.0
    %v1366 = vmax.f32 %v1184, 0.0
    %v1367 = vmax.f32 %v1189, 0.0
    %v1368 = vmax.f32 %v1194, 0.0
    %v1369 = vmax.f32 %v1199, 0.0
    %v1370 = vmax.f32 %v1204, 0.0
    %v1371 = vmax.f32 %v1209, 0.0
    %v1372 = vmax.f32 %v1214, 0.0
    %v1373 = vmax.f32 %v1219, 0.0
    %v1374 = vmax.f32 %v1224, 0.0
    %v1375 = vmax.f32 %v1229, 0.0
    %v1376 = vmax.f32 %v1234, 0.0
    %v1377 = vmax.f32 %v1239, 0.0
    %v1378 = vmax.f32 %v1244, 0.0
    %v1379 = vmax.f32 %v1249, 0.0
    %v1380 = vmax.f32 %v1254, 0.0
    %v1381 = vmax.f32 %v1259, 0.0
    %v1382 = vmax.f32 %v1264, 0.0
    %v1383 = vmax.f32 %v1269, 0.0
    %v1384 = vmax.f32 %v1274, 0.0
    %v1385 = vmax.f32 %v1279, 0.0
    %v1386 = vmax.f32 %v1284, 0.0
    %v1387 = vmax.f32 %v1289, 0.0
    %v1388 = vmax.f32 %v1294, 0.0
    %v1389 = vmax.f32 %v1299, 0.0
    %v1390 = vmax.f32 %v1304, 0.0
    %v1391 = vmax.f32 %v1309, 0.0
    %v1392 = vmax.f32 %v1314, 0.0
    %v1393 = vmax.f32 %v1319, 0.0
    %v1394 = vmax.f32 %v1324, 0.0
    %v1395 = vmax.f32 %v1329, 0.0
    %s1396 = scalar_lea.vmem %s2, 64
    %v1397 = vld [vmem:[%s1396] sm:$0xff]
    %v1398 = vld [vmem:[%s1396 + $0x8] sm:$0xff]
    %v1399 = vld [vmem:[%s1396 + $0x10] sm:$0xff]
    %v1400 = vld [vmem:[%s1396 + $0x18] sm:$0xff]
    %v1401 = vld [vmem:[%s1396 + $0x20] sm:$0xff]
    %v1402 = vld [vmem:[%s1396 + $0x28] sm:$0xff]
    %v1403 = vld [vmem:[%s1396 + $0x30] sm:$0xff]
    %v1404 = vld [vmem:[%s1396 + $0x38] sm:$0xff]
    %s1405 = scalar_lea.vmem %s3, 2
    %v1406 = vld [vmem:[%s1405] sm:$0x1]
    %v1408 = vlaneseq
    %v1409 = vshrl.u32 %v1408, 7
    %v1410 = vsub.s32 0, %v1409
    %v1411 = vrot.slane %v1406, %v1410
    %v1414 = vsel %vm754, %v1332, 0
    %v1417 = vsel %vm754, %v1333, 0
    %v1420 = vsel %vm754, %v1334, 0
    %v1423 = vsel %vm754, %v1335, 0
    %v1426 = vsel %vm754, %v1336, 0
    %v1429 = vsel %vm754, %v1337, 0
    %v1432 = vsel %vm754, %v1338, 0
    %v1435 = vsel %vm754, %v1339, 0
    %v1438 = vsel %vm754, %v1340, 0
    %v1441 = vsel %vm754, %v1341, 0
    %v1444 = vsel %vm754, %v1342, 0
    %v1447 = vsel %vm754, %v1343, 0
    %v1450 = vsel %vm754, %v1344, 0
    %v1453 = vsel %vm754, %v1345, 0
    %v1456 = vsel %vm754, %v1346, 0
    %v1459 = vsel %vm754, %v1347, 0
    %v1462 = vsel %vm754, %v1348, 0
    %v1465 = vsel %vm754, %v1349, 0
    %v1468 = vsel %vm754, %v1350, 0
    %v1471 = vsel %vm754, %v1351, 0
    %v1474 = vsel %vm754, %v1352, 0
    %v1477 = vsel %vm754, %v1353, 0
    %v1480 = vsel %vm754, %v1354, 0
    %v1483 = vsel %vm754, %v1355, 0
    %v1486 = vsel %vm754, %v1356, 0
    %v1489 = vsel %vm754, %v1357, 0
    %v1492 = vsel %vm754, %v1358, 0
    %v1495 = vsel %vm754, %v1359, 0
    %v1498 = vsel %vm754, %v1360, 0
    %v1501 = vsel %vm754, %v1361, 0
    %v1504 = vsel %vm754, %v1362, 0
    %v1507 = vsel %vm754, %v1363, 0
    %v1510 = vsel %vm754, %v1364, 0
    %v1513 = vsel %vm754, %v1365, 0
    %v1516 = vsel %vm754, %v1366, 0
    %v1519 = vsel %vm754, %v1367, 0
    %v1522 = vsel %vm754, %v1368, 0
    %v1525 = vsel %vm754, %v1369, 0
    %v1528 = vsel %vm754, %v1370, 0
    %v1531 = vsel %vm754, %v1371, 0
    %v1534 = vsel %vm754, %v1372, 0
    %v1537 = vsel %vm754, %v1373, 0
    %v1540 = vsel %vm754, %v1374, 0
    %v1543 = vsel %vm754, %v1375, 0
    %v1546 = vsel %vm754, %v1376, 0
    %v1549 = vsel %vm754, %v1377, 0
    %v1552 = vsel %vm754, %v1378, 0
    %v1555 = vsel %vm754, %v1379, 0
    %v1558 = vsel %vm754, %v1380, 0
    %v1561 = vsel %vm754, %v1381, 0
    %v1564 = vsel %vm754, %v1382, 0
    %v1567 = vsel %vm754, %v1383, 0
    %v1570 = vsel %vm754, %v1384, 0
    %v1573 = vsel %vm754, %v1385, 0
    %v1576 = vsel %vm754, %v1386, 0
    %v1579 = vsel %vm754, %v1387, 0
    %v1582 = vsel %vm754, %v1388, 0
    %v1585 = vsel %vm754, %v1389, 0
    %v1588 = vsel %vm754, %v1390, 0
    %v1591 = vsel %vm754, %v1391, 0
    %v1594 = vsel %vm754, %v1392, 0
    %v1597 = vsel %vm754, %v1393, 0
    %v1600 = vsel %vm754, %v1394, 0
    %v1603 = vsel %vm754, %v1395, 0
    %1605 = vmatprep.subr.mxu0 0.0
    %1606 = vmatpush1.msra.mxu0 %v1397
    %1607 = vmatprep.subr.mxu0 0.0
    %1608 = vmatpush1.msra.mxu0 %v1398
    %1609 = vmatprep.subr.mxu0 0.0
    %1610 = vmatpush1.msra.mxu0 %v1399
    %1611 = vmatprep.subr.mxu0 0.0
    %1612 = vmatpush1.msra.mxu0 %v1400
    %1613 = vmatprep.subr.mxu0 0.0
    %1614 = vmatpush1.msra.mxu0 %v1401
    %1615 = vmatprep.subr.mxu0 0.0
    %1616 = vmatpush1.msra.mxu0 %v1402
    %1617 = vmatprep.subr.mxu0 0.0
    %1618 = vmatpush1.msra.mxu0 %v1403
    %1619 = vmatprep.subr.mxu0 0.0
    %1620 = vmatpush1.msra.mxu0 %v1404
    %1621 = vmatprep.subr.mxu0 0.0
    %1622 = vmatpush1.msra.mxu0 0.0
    %1623 = vmatprep.subr.mxu0 0.0
    %1624 = vmatpush1.msra.mxu0 0.0
    %1625 = vmatprep.subr.mxu0 0.0
    %1626 = vmatpush1.msra.mxu0 0.0
    %1627 = vmatprep.subr.mxu0 0.0
    %1628 = vmatpush1.msra.mxu0 0.0
    %1629 = vmatprep.subr.mxu0 0.0
    %1630 = vmatpush1.msra.mxu0 0.0
    %1631 = vmatprep.subr.mxu0 0.0
    %1632 = vmatpush1.msra.mxu0 0.0
    %1633 = vmatprep.subr.mxu0 0.0
    %1634 = vmatpush1.msra.mxu0 0.0
    %1635 = vmatprep.subr.mxu0 0.0
    %1636 = vmatpush1.msra.mxu0 0.0
    %1637 = vmatprep.subr.mxu0 0.0
    %1638 = vmatpush1.msra.mxu0 0.0
    %1639 = vmatprep.subr.mxu0 0.0
    %1640 = vmatpush1.msra.mxu0 0.0
    %1641 = vmatprep.subr.mxu0 0.0
    %1642 = vmatpush1.msra.mxu0 0.0
    %1643 = vmatprep.subr.mxu0 0.0
    %1644 = vmatpush1.msra.mxu0 0.0
    %1645 = vmatprep.subr.mxu0 0.0
    %1646 = vmatpush1.msra.mxu0 0.0
    %1647 = vmatprep.subr.mxu0 0.0
    %1648 = vmatpush1.msra.mxu0 0.0
    %1649 = vmatprep.subr.mxu0 0.0
    %1650 = vmatpush1.msra.mxu0 0.0
    %1651 = vmatprep.subr.mxu0 0.0
    %1652 = vmatpush1.msra.mxu0 0.0
    %1653 = vmatprep.subr.mxu0 0.0
    %1654 = vmatpush1.msra.mxu0 0.0
    %1655 = vmatprep.subr.mxu0 0.0
    %1656 = vmatpush1.msra.mxu0 0.0
    %1657 = vmatprep.subr.mxu0 0.0
    %1658 = vmatpush1.msra.mxu0 0.0
    %1659 = vmatprep.subr.mxu0 0.0
    %1660 = vmatpush1.msra.mxu0 0.0
    %1661 = vmatprep.subr.mxu0 0.0
    %1662 = vmatpush1.msra.mxu0 0.0
    %1663 = vmatprep.subr.mxu0 0.0
    %1664 = vmatpush1.msra.mxu0 0.0
    %1665 = vmatprep.subr.mxu0 0.0
    %1666 = vmatpush1.msra.mxu0 0.0
    %1667 = vmatprep.subr.mxu0 0.0
    %1668 = vmatpush1.msra.mxu0 0.0
    %1669 = vmatprep.mubr.f32.mxu0 0.0
    %1670 = vmatmul.mubr.f32.gmra.mrb[0].mxu0 %v1414
    %v1671 = vpop.f32.mrb[0].mxu0
    %v1672 = vadd.f32 %v1411, %v1671
    %v1673 = vpop.f32.mrb[0].mxu0
    %1674 = vmatprep.mubr.f32.mxu0 0.0
    %1675 = vmatmul.mubr.f32.gmra.mrb[0].mxu0 %v1417
    %v1676 = vpop.f32.mrb[0].mxu0
    %v1677 = vadd.f32 %v1411, %v1676
    %v1678 = vpop.f32.mrb[0].mxu0
    %1679 = vmatprep.mubr.f32.mxu0 0.0
    %1680 = vmatmul.mubr.f32.gmra.mrb[0].mxu0 %v1420
    %v1681 = vpop.f32.mrb[0].mxu0
    %v1682 = vadd.f32 %v1411, %v1681
    %v1683 = vpop.f32.mrb[0].mxu0
    %1684 = vmatprep.mubr.f32.mxu0 0.0
    %1685 = vmatmul.mubr.f32.gmra.mrb[0].mxu0 %v1423
    %v1686 = vpop.f32.mrb[0].mxu0
    %v1687 = vadd.f32 %v1411, %v1686
    %v1688 = vpop.f32.mrb[0].mxu0
    %1689 = vmatprep.mubr.f32.mxu0 0.0
    %1690 = vmatmul.mubr.f32.gmra.mrb[0].mxu0 %v1426
    %v1691 = vpop.f32.mrb[0].mxu0
    %v1692 = vadd.f32 %v1411, %v1691
    %v1693 = vpop.f32.mrb[0].mxu0
    %1694 = vmatprep.mubr.f32.mxu0 0.0
    %1695 = vmatmul.mubr.f32.gmra.mrb[0].mxu0 %v1429
    %v1696 = vpop.f32.mrb[0].mxu0
    %v1697 = vadd.f32 %v1411, %v1696
    %v1698 = vpop.f32.mrb[0].mxu0
    %1699 = vmatprep.mubr.f32.mxu0 0.0
    %1700 = vmatmul.mubr.f32.gmra.mrb[0].mxu0 %v1432
    %v1701 = vpop.f32.mrb[0].mxu0
    %v1702 = vadd.f32 %v1411, %v1701
    %v1703 = vpop.f32.mrb[0].mxu0
    %1704 = vmatprep.mubr.f32.mxu0 0.0
    %1705 = vmatmul.mubr.f32.gmra.mrb[0].mxu0 %v1435
    %v1706 = vpop.f32.mrb[0].mxu0
    %v1707 = vadd.f32 %v1411, %v1706
    %v1708 = vpop.f32.mrb[0].mxu0
    %1709 = vmatprep.mubr.f32.mxu0 0.0
    %1710 = vmatmul.mubr.f32.gmra.mrb[0].mxu0 %v1438
    %v1711 = vpop.f32.mrb[0].mxu0
    %v1712 = vadd.f32 %v1411, %v1711
    %v1713 = vpop.f32.mrb[0].mxu0
    %1714 = vmatprep.mubr.f32.mxu0 0.0
    %1715 = vmatmul.mubr.f32.gmra.mrb[0].mxu0 %v1441
    %v1716 = vpop.f32.mrb[0].mxu0
    %v1717 = vadd.f32 %v1411, %v1716
    %v1718 = vpop.f32.mrb[0].mxu0
    %1719 = vmatprep.mubr.f32.mxu0 0.0
    %1720 = vmatmul.mubr.f32.gmra.mrb[0].mxu0 %v1444
    %v1721 = vpop.f32.mrb[0].mxu0
    %v1722 = vadd.f32 %v1411, %v1721
    %v1723 = vpop.f32.mrb[0].mxu0
    %1724 = vmatprep.mubr.f32.mxu0 0.0
    %1725 = vmatmul.mubr.f32.gmra.mrb[0].mxu0 %v1447
    %v1726 = vpop.f32.mrb[0].mxu0
    %v1727 = vadd.f32 %v1411, %v1726
    %v1728 = vpop.f32.mrb[0].mxu0
    %1729 = vmatprep.mubr.f32.mxu0 0.0
    %1730 = vmatmul.mubr.f32.gmra.mrb[0].mxu0 %v1450
    %v1731 = vpop.f32.mrb[0].mxu0
    %v1732 = vadd.f32 %v1411, %v1731
    %v1733 = vpop.f32.mrb[0].mxu0
    %1734 = vmatprep.mubr.f32.mxu0 0.0
    %1735 = vmatmul.mubr.f32.gmra.mrb[0].mxu0 %v1453
    %v1736 = vpop.f32.mrb[0].mxu0
    %v1737 = vadd.f32 %v1411, %v1736
    %v1738 = vpop.f32.mrb[0].mxu0
    %1739 = vmatprep.mubr.f32.mxu0 0.0
    %1740 = vmatmul.mubr.f32.gmra.mrb[0].mxu0 %v1456
    %v1741 = vpop.f32.mrb[0].mxu0
    %v1742 = vadd.f32 %v1411, %v1741
    %v1743 = vpop.f32.mrb[0].mxu0
    %1744 = vmatprep.mubr.f32.mxu0 0.0
    %1745 = vmatmul.mubr.f32.gmra.mrb[0].mxu0 %v1459
    %v1746 = vpop.f32.mrb[0].mxu0
    %v1747 = vadd.f32 %v1411, %v1746
    %v1748 = vpop.f32.mrb[0].mxu0
    %1749 = vmatprep.mubr.f32.mxu0 0.0
    %1750 = vmatmul.mubr.f32.gmra.mrb[0].mxu0 %v1462
    %v1751 = vpop.f32.mrb[0].mxu0
    %v1752 = vadd.f32 %v1411, %v1751
    %v1753 = vpop.f32.mrb[0].mxu0
    %1754 = vmatprep.mubr.f32.mxu0 0.0
    %1755 = vmatmul.mubr.f32.gmra.mrb[0].mxu0 %v1465
    %v1756 = vpop.f32.mrb[0].mxu0
    %v1757 = vadd.f32 %v1411, %v1756
    %v1758 = vpop.f32.mrb[0].mxu0
    %1759 = vmatprep.mubr.f32.mxu0 0.0
    %1760 = vmatmul.mubr.f32.gmra.mrb[0].mxu0 %v1468
    %v1761 = vpop.f32.mrb[0].mxu0
    %v1762 = vadd.f32 %v1411, %v1761
    %v1763 = vpop.f32.mrb[0].mxu0
    %1764 = vmatprep.mubr.f32.mxu0 0.0
    %1765 = vmatmul.mubr.f32.gmra.mrb[0].mxu0 %v1471
    %v1766 = vpop.f32.mrb[0].mxu0
    %v1767 = vadd.f32 %v1411, %v1766
    %v1768 = vpop.f32.mrb[0].mxu0
    %1769 = vmatprep.mubr.f32.mxu0 0.0
    %1770 = vmatmul.mubr.f32.gmra.mrb[0].mxu0 %v1474
    %v1771 = vpop.f32.mrb[0].mxu0
    %v1772 = vadd.f32 %v1411, %v1771
    %v1773 = vpop.f32.mrb[0].mxu0
    %1774 = vmatprep.mubr.f32.mxu0 0.0
    %1775 = vmatmul.mubr.f32.gmra.mrb[0].mxu0 %v1477
    %v1776 = vpop.f32.mrb[0].mxu0
    %v1777 = vadd.f32 %v1411, %v1776
    %v1778 = vpop.f32.mrb[0].mxu0
    %1779 = vmatprep.mubr.f32.mxu0 0.0
    %1780 = vmatmul.mubr.f32.gmra.mrb[0].mxu0 %v1480
    %v1781 = vpop.f32.mrb[0].mxu0
    %v1782 = vadd.f32 %v1411, %v1781
    %v1783 = vpop.f32.mrb[0].mxu0
    %1784 = vmatprep.mubr.f32.mxu0 0.0
    %1785 = vmatmul.mubr.f32.gmra.mrb[0].mxu0 %v1483
    %v1786 = vpop.f32.mrb[0].mxu0
    %v1787 = vadd.f32 %v1411, %v1786
    %v1788 = vpop.f32.mrb[0].mxu0
    %1789 = vmatprep.mubr.f32.mxu0 0.0
    %1790 = vmatmul.mubr.f32.gmra.mrb[0].mxu0 %v1486
    %v1791 = vpop.f32.mrb[0].mxu0
    %v1792 = vadd.f32 %v1411, %v1791
    %v1793 = vpop.f32.mrb[0].mxu0
    %1794 = vmatprep.mubr.f32.mxu0 0.0
    %1795 = vmatmul.mubr.f32.gmra.mrb[0].mxu0 %v1489
    %v1796 = vpop.f32.mrb[0].mxu0
    %v1797 = vadd.f32 %v1411, %v1796
    %v1798 = vpop.f32.mrb[0].mxu0
    %1799 = vmatprep.mubr.f32.mxu0 0.0
    %1800 = vmatmul.mubr.f32.gmra.mrb[0].mxu0 %v1492
    %v1801 = vpop.f32.mrb[0].mxu0
    %v1802 = vadd.f32 %v1411, %v1801
    %v1803 = vpop.f32.mrb[0].mxu0
    %1804 = vmatprep.mubr.f32.mxu0 0.0
    %1805 = vmatmul.mubr.f32.gmra.mrb[0].mxu0 %v1495
    %v1806 = vpop.f32.mrb[0].mxu0
    %v1807 = vadd.f32 %v1411, %v1806
    %v1808 = vpop.f32.mrb[0].mxu0
    %1809 = vmatprep.mubr.f32.mxu0 0.0
    %1810 = vmatmul.mubr.f32.gmra.mrb[0].mxu0 %v1498
    %v1811 = vpop.f32.mrb[0].mxu0
    %v1812 = vadd.f32 %v1411, %v1811
    %v1813 = vpop.f32.mrb[0].mxu0
    %1814 = vmatprep.mubr.f32.mxu0 0.0
    %1815 = vmatmul.mubr.f32.gmra.mrb[0].mxu0 %v1501
    %v1816 = vpop.f32.mrb[0].mxu0
    %v1817 = vadd.f32 %v1411, %v1816
    %v1818 = vpop.f32.mrb[0].mxu0
    %1819 = vmatprep.mubr.f32.mxu0 0.0
    %1820 = vmatmul.mubr.f32.gmra.mrb[0].mxu0 %v1504
    %v1821 = vpop.f32.mrb[0].mxu0
    %v1822 = vadd.f32 %v1411, %v1821
    %v1823 = vpop.f32.mrb[0].mxu0
    %1824 = vmatprep.mubr.f32.mxu0 0.0
    %1825 = vmatmul.mubr.f32.gmra.mrb[0].mxu0 %v1507
    %v1826 = vpop.f32.mrb[0].mxu0
    %v1827 = vadd.f32 %v1411, %v1826
    %v1828 = vpop.f32.mrb[0].mxu0
    %1829 = vmatprep.mubr.f32.mxu0 0.0
    %1830 = vmatmul.mubr.f32.gmra.mrb[0].mxu0 %v1510
    %v1831 = vpop.f32.mrb[0].mxu0
    %v1832 = vadd.f32 %v1411, %v1831
    %v1833 = vpop.f32.mrb[0].mxu0
    %1834 = vmatprep.mubr.f32.mxu0 0.0
    %1835 = vmatmul.mubr.f32.gmra.mrb[0].mxu0 %v1513
    %v1836 = vpop.f32.mrb[0].mxu0
    %v1837 = vadd.f32 %v1411, %v1836
    %v1838 = vpop.f32.mrb[0].mxu0
    %1839 = vmatprep.mubr.f32.mxu0 0.0
    %1840 = vmatmul.mubr.f32.gmra.mrb[0].mxu0 %v1516
    %v1841 = vpop.f32.mrb[0].mxu0
    %v1842 = vadd.f32 %v1411, %v1841
    %v1843 = vpop.f32.mrb[0].mxu0
    %1844 = vmatprep.mubr.f32.mxu0 0.0
    %1845 = vmatmul.mubr.f32.gmra.mrb[0].mxu0 %v1519
    %v1846 = vpop.f32.mrb[0].mxu0
    %v1847 = vadd.f32 %v1411, %v1846
    %v1848 = vpop.f32.mrb[0].mxu0
    %1849 = vmatprep.mubr.f32.mxu0 0.0
    %1850 = vmatmul.mubr.f32.gmra.mrb[0].mxu0 %v1522
    %v1851 = vpop.f32.mrb[0].mxu0
    %v1852 = vadd.f32 %v1411, %v1851
    %v1853 = vpop.f32.mrb[0].mxu0
    %1854 = vmatprep.mubr.f32.mxu0 0.0
    %1855 = vmatmul.mubr.f32.gmra.mrb[0].mxu0 %v1525
    %v1856 = vpop.f32.mrb[0].mxu0
    %v1857 = vadd.f32 %v1411, %v1856
    %v1858 = vpop.f32.mrb[0].mxu0
    %1859 = vmatprep.mubr.f32.mxu0 0.0
    %1860 = vmatmul.mubr.f32.gmra.mrb[0].mxu0 %v1528
    %v1861 = vpop.f32.mrb[0].mxu0
    %v1862 = vadd.f32 %v1411, %v1861
    %v1863 = vpop.f32.mrb[0].mxu0
    %1864 = vmatprep.mubr.f32.mxu0 0.0
    %1865 = vmatmul.mubr.f32.gmra.mrb[0].mxu0 %v1531
    %v1866 = vpop.f32.mrb[0].mxu0
    %v1867 = vadd.f32 %v1411, %v1866
    %v1868 = vpop.f32.mrb[0].mxu0
    %1869 = vmatprep.mubr.f32.mxu0 0.0
    %1870 = vmatmul.mubr.f32.gmra.mrb[0].mxu0 %v1534
    %v1871 = vpop.f32.mrb[0].mxu0
    %v1872 = vadd.f32 %v1411, %v1871
    %v1873 = vpop.f32.mrb[0].mxu0
    %1874 = vmatprep.mubr.f32.mxu0 0.0
    %1875 = vmatmul.mubr.f32.gmra.mrb[0].mxu0 %v1537
    %v1876 = vpop.f32.mrb[0].mxu0
    %v1877 = vadd.f32 %v1411, %v1876
    %v1878 = vpop.f32.mrb[0].mxu0
    %1879 = vmatprep.mubr.f32.mxu0 0.0
    %1880 = vmatmul.mubr.f32.gmra.mrb[0].mxu0 %v1540
    %v1881 = vpop.f32.mrb[0].mxu0
    %v1882 = vadd.f32 %v1411, %v1881
    %v1883 = vpop.f32.mrb[0].mxu0
    %1884 = vmatprep.mubr.f32.mxu0 0.0
    %1885 = vmatmul.mubr.f32.gmra.mrb[0].mxu0 %v1543
    %v1886 = vpop.f32.mrb[0].mxu0
    %v1887 = vadd.f32 %v1411, %v1886
    %v1888 = vpop.f32.mrb[0].mxu0
    %1889 = vmatprep.mubr.f32.mxu0 0.0
    %1890 = vmatmul.mubr.f32.gmra.mrb[0].mxu0 %v1546
    %v1891 = vpop.f32.mrb[0].mxu0
    %v1892 = vadd.f32 %v1411, %v1891
    %v1893 = vpop.f32.mrb[0].mxu0
    %1894 = vmatprep.mubr.f32.mxu0 0.0
    %1895 = vmatmul.mubr.f32.gmra.mrb[0].mxu0 %v1549
    %v1896 = vpop.f32.mrb[0].mxu0
    %v1897 = vadd.f32 %v1411, %v1896
    %v1898 = vpop.f32.mrb[0].mxu0
    %1899 = vmatprep.mubr.f32.mxu0 0.0
    %1900 = vmatmul.mubr.f32.gmra.mrb[0].mxu0 %v1552
    %v1901 = vpop.f32.mrb[0].mxu0
    %v1902 = vadd.f32 %v1411, %v1901
    %v1903 = vpop.f32.mrb[0].mxu0
    %1904 = vmatprep.mubr.f32.mxu0 0.0
    %1905 = vmatmul.mubr.f32.gmra.mrb[0].mxu0 %v1555
    %v1906 = vpop.f32.mrb[0].mxu0
    %v1907 = vadd.f32 %v1411, %v1906
    %v1908 = vpop.f32.mrb[0].mxu0
    %1909 = vmatprep.mubr.f32.mxu0 0.0
    %1910 = vmatmul.mubr.f32.gmra.mrb[0].mxu0 %v1558
    %v1911 = vpop.f32.mrb[0].mxu0
    %v1912 = vadd.f32 %v1411, %v1911
    %v1913 = vpop.f32.mrb[0].mxu0
    %1914 = vmatprep.mubr.f32.mxu0 0.0
    %1915 = vmatmul.mubr.f32.gmra.mrb[0].mxu0 %v1561
    %v1916 = vpop.f32.mrb[0].mxu0
    %v1917 = vadd.f32 %v1411, %v1916
    %v1918 = vpop.f32.mrb[0].mxu0
    %1919 = vmatprep.mubr.f32.mxu0 0.0
    %1920 = vmatmul.mubr.f32.gmra.mrb[0].mxu0 %v1564
    %v1921 = vpop.f32.mrb[0].mxu0
    %v1922 = vadd.f32 %v1411, %v1921
    %v1923 = vpop.f32.mrb[0].mxu0
    %1924 = vmatprep.mubr.f32.mxu0 0.0
    %1925 = vmatmul.mubr.f32.gmra.mrb[0].mxu0 %v1567
    %v1926 = vpop.f32.mrb[0].mxu0
    %v1927 = vadd.f32 %v1411, %v1926
    %v1928 = vpop.f32.mrb[0].mxu0
    %1929 = vmatprep.mubr.f32.mxu0 0.0
    %1930 = vmatmul.mubr.f32.gmra.mrb[0].mxu0 %v1570
    %v1931 = vpop.f32.mrb[0].mxu0
    %v1932 = vadd.f32 %v1411, %v1931
    %v1933 = vpop.f32.mrb[0].mxu0
    %1934 = vmatprep.mubr.f32.mxu0 0.0
    %1935 = vmatmul.mubr.f32.gmra.mrb[0].mxu0 %v1573
    %v1936 = vpop.f32.mrb[0].mxu0
    %v1937 = vadd.f32 %v1411, %v1936
    %v1938 = vpop.f32.mrb[0].mxu0
    %1939 = vmatprep.mubr.f32.mxu0 0.0
    %1940 = vmatmul.mubr.f32.gmra.mrb[0].mxu0 %v1576
    %v1941 = vpop.f32.mrb[0].mxu0
    %v1942 = vadd.f32 %v1411, %v1941
    %v1943 = vpop.f32.mrb[0].mxu0
    %1944 = vmatprep.mubr.f32.mxu0 0.0
    %1945 = vmatmul.mubr.f32.gmra.mrb[0].mxu0 %v1579
    %v1946 = vpop.f32.mrb[0].mxu0
    %v1947 = vadd.f32 %v1411, %v1946
    %v1948 = vpop.f32.mrb[0].mxu0
    %1949 = vmatprep.mubr.f32.mxu0 0.0
    %1950 = vmatmul.mubr.f32.gmra.mrb[0].mxu0 %v1582
    %v1951 = vpop.f32.mrb[0].mxu0
    %v1952 = vadd.f32 %v1411, %v1951
    %v1953 = vpop.f32.mrb[0].mxu0
    %1954 = vmatprep.mubr.f32.mxu0 0.0
    %1955 = vmatmul.mubr.f32.gmra.mrb[0].mxu0 %v1585
    %v1956 = vpop.f32.mrb[0].mxu0
    %v1957 = vadd.f32 %v1411, %v1956
    %v1958 = vpop.f32.mrb[0].mxu0
    %1959 = vmatprep.mubr.f32.mxu0 0.0
    %1960 = vmatmul.mubr.f32.gmra.mrb[0].mxu0 %v1588
    %v1961 = vpop.f32.mrb[0].mxu0
    %v1962 = vadd.f32 %v1411, %v1961
    %v1963 = vpop.f32.mrb[0].mxu0
    %1964 = vmatprep.mubr.f32.mxu0 0.0
    %1965 = vmatmul.mubr.f32.gmra.mrb[0].mxu0 %v1591
    %v1966 = vpop.f32.mrb[0].mxu0
    %v1967 = vadd.f32 %v1411, %v1966
    %v1968 = vpop.f32.mrb[0].mxu0
    %1969 = vmatprep.mubr.f32.mxu0 0.0
    %1970 = vmatmul.mubr.f32.gmra.mrb[0].mxu0 %v1594
    %v1971 = vpop.f32.mrb[0].mxu0
    %v1972 = vadd.f32 %v1411, %v1971
    %v1973 = vpop.f32.mrb[0].mxu0
    %1974 = vmatprep.mubr.f32.mxu0 0.0
    %1975 = vmatmul.mubr.f32.gmra.mrb[0].mxu0 %v1597
    %v1976 = vpop.f32.mrb[0].mxu0
    %v1977 = vadd.f32 %v1411, %v1976
    %v1978 = vpop.f32.mrb[0].mxu0
    %1979 = vmatprep.mubr.f32.mxu0 0.0
    %1980 = vmatmul.mubr.f32.gmra.mrb[0].mxu0 %v1600
    %v1981 = vpop.f32.mrb[0].mxu0
    %v1982 = vadd.f32 %v1411, %v1981
    %v1983 = vpop.f32.mrb[0].mxu0
    %1984 = vmatprep.mubr.f32.mxu0 0.0
    %1985 = vmatmul.mubr.f32.gmra.mrb[0].mxu0 %v1603
    %v1986 = vpop.f32.mrb[0].mxu0
    %v1987 = vadd.f32 %v1411, %v1986
    %v1988 = vpop.f32.mrb[0].mxu0
    %1989 = vdwg.mxu0
    %v1990 = vadd.f32 %v356, %v1672
    %v1991 = vadd.f32 %v361, %v1677
    %v1992 = vadd.f32 %v366, %v1682
    %v1993 = vadd.f32 %v371, %v1687
    %v1994 = vadd.f32 %v376, %v1692
    %v1995 = vadd.f32 %v381, %v1697
    %v1996 = vadd.f32 %v386, %v1702
    %v1997 = vadd.f32 %v391, %v1707
    %v1998 = vadd.f32 %v396, %v1712
    %v1999 = vadd.f32 %v401, %v1717
    %v2000 = vadd.f32 %v406, %v1722
    %v2001 = vadd.f32 %v411, %v1727
    %v2002 = vadd.f32 %v416, %v1732
    %v2003 = vadd.f32 %v421, %v1737
    %v2004 = vadd.f32 %v426, %v1742
    %v2005 = vadd.f32 %v431, %v1747
    %v2006 = vadd.f32 %v436, %v1752
    %v2007 = vadd.f32 %v441, %v1757
    %v2008 = vadd.f32 %v446, %v1762
    %v2009 = vadd.f32 %v451, %v1767
    %v2010 = vadd.f32 %v456, %v1772
    %v2011 = vadd.f32 %v461, %v1777
    %v2012 = vadd.f32 %v466, %v1782
    %v2013 = vadd.f32 %v471, %v1787
    %v2014 = vadd.f32 %v476, %v1792
    %v2015 = vadd.f32 %v481, %v1797
    %v2016 = vadd.f32 %v486, %v1802
    %v2017 = vadd.f32 %v491, %v1807
    %v2018 = vadd.f32 %v496, %v1812
    %v2019 = vadd.f32 %v501, %v1817
    %v2020 = vadd.f32 %v506, %v1822
    %v2021 = vadd.f32 %v511, %v1827
    %v2022 = vadd.f32 %v516, %v1832
    %v2023 = vadd.f32 %v521, %v1837
    %v2024 = vadd.f32 %v526, %v1842
    %v2025 = vadd.f32 %v531, %v1847
    %v2026 = vadd.f32 %v536, %v1852
    %v2027 = vadd.f32 %v541, %v1857
    %v2028 = vadd.f32 %v546, %v1862
    %v2029 = vadd.f32 %v551, %v1867
    %v2030 = vadd.f32 %v556, %v1872
    %v2031 = vadd.f32 %v561, %v1877
    %v2032 = vadd.f32 %v566, %v1882
    %v2033 = vadd.f32 %v571, %v1887
    %v2034 = vadd.f32 %v576, %v1892
    %v2035 = vadd.f32 %v581, %v1897
    %v2036 = vadd.f32 %v586, %v1902
    %v2037 = vadd.f32 %v591, %v1907
    %v2038 = vadd.f32 %v596, %v1912
    %v2039 = vadd.f32 %v601, %v1917
    %v2040 = vadd.f32 %v606, %v1922
    %v2041 = vadd.f32 %v611, %v1927
    %v2042 = vadd.f32 %v616, %v1932
    %v2043 = vadd.f32 %v621, %v1937
    %v2044 = vadd.f32 %v626, %v1942
    %v2045 = vadd.f32 %v631, %v1947
    %v2046 = vadd.f32 %v636, %v1952
    %v2047 = vadd.f32 %v641, %v1957
    %v2048 = vadd.f32 %v646, %v1962
    %v2049 = vadd.f32 %v651, %v1967
    %v2050 = vadd.f32 %v656, %v1972
    %v2051 = vadd.f32 %v661, %v1977
    %v2052 = vadd.f32 %v666, %v1982
    %v2053 = vadd.f32 %v671, %v1987
    %v2054 = vmax.f32 %v1990, 0.0
    %v2055 = vmax.f32 %v1991, 0.0
    %v2056 = vmax.f32 %v1992, 0.0
    %v2057 = vmax.f32 %v1993, 0.0
    %v2058 = vmax.f32 %v1994, 0.0
    %v2059 = vmax.f32 %v1995, 0.0
    %v2060 = vmax.f32 %v1996, 0.0
    %v2061 = vmax.f32 %v1997, 0.0
    %v2062 = vmax.f32 %v1998, 0.0
    %v2063 = vmax.f32 %v1999, 0.0
    %v2064 = vmax.f32 %v2000, 0.0
    %v2065 = vmax.f32 %v2001, 0.0
    %v2066 = vmax.f32 %v2002, 0.0
    %v2067 = vmax.f32 %v2003, 0.0
    %v2068 = vmax.f32 %v2004, 0.0
    %v2069 = vmax.f32 %v2005, 0.0
    %v2070 = vmax.f32 %v2006, 0.0
    %v2071 = vmax.f32 %v2007, 0.0
    %v2072 = vmax.f32 %v2008, 0.0
    %v2073 = vmax.f32 %v2009, 0.0
    %v2074 = vmax.f32 %v2010, 0.0
    %v2075 = vmax.f32 %v2011, 0.0
    %v2076 = vmax.f32 %v2012, 0.0
    %v2077 = vmax.f32 %v2013, 0.0
    %v2078 = vmax.f32 %v2014, 0.0
    %v2079 = vmax.f32 %v2015, 0.0
    %v2080 = vmax.f32 %v2016, 0.0
    %v2081 = vmax.f32 %v2017, 0.0
    %v2082 = vmax.f32 %v2018, 0.0
    %v2083 = vmax.f32 %v2019, 0.0
    %v2084 = vmax.f32 %v2020, 0.0
    %v2085 = vmax.f32 %v2021, 0.0
    %v2086 = vmax.f32 %v2022, 0.0
    %v2087 = vmax.f32 %v2023, 0.0
    %v2088 = vmax.f32 %v2024, 0.0
    %v2089 = vmax.f32 %v2025, 0.0
    %v2090 = vmax.f32 %v2026, 0.0
    %v2091 = vmax.f32 %v2027, 0.0
    %v2092 = vmax.f32 %v2028, 0.0
    %v2093 = vmax.f32 %v2029, 0.0
    %v2094 = vmax.f32 %v2030, 0.0
    %v2095 = vmax.f32 %v2031, 0.0
    %v2096 = vmax.f32 %v2032, 0.0
    %v2097 = vmax.f32 %v2033, 0.0
    %v2098 = vmax.f32 %v2034, 0.0
    %v2099 = vmax.f32 %v2035, 0.0
    %v2100 = vmax.f32 %v2036, 0.0
    %v2101 = vmax.f32 %v2037, 0.0
    %v2102 = vmax.f32 %v2038, 0.0
    %v2103 = vmax.f32 %v2039, 0.0
    %v2104 = vmax.f32 %v2040, 0.0
    %v2105 = vmax.f32 %v2041, 0.0
    %v2106 = vmax.f32 %v2042, 0.0
    %v2107 = vmax.f32 %v2043, 0.0
    %v2108 = vmax.f32 %v2044, 0.0
    %v2109 = vmax.f32 %v2045, 0.0
    %v2110 = vmax.f32 %v2046, 0.0
    %v2111 = vmax.f32 %v2047, 0.0
    %v2112 = vmax.f32 %v2048, 0.0
    %v2113 = vmax.f32 %v2049, 0.0
    %v2114 = vmax.f32 %v2050, 0.0
    %v2115 = vmax.f32 %v2051, 0.0
    %v2116 = vmax.f32 %v2052, 0.0
    %v2117 = vmax.f32 %v2053, 0.0
    %v2118 = vld [vmem:[%s4] sm:$0xff]
    %v2119 = vld [vmem:[%s4 + $0x8] sm:$0xff]
    %v2120 = vld [vmem:[%s4 + $0x10] sm:$0xff]
    %v2121 = vld [vmem:[%s4 + $0x18] sm:$0xff]
    %v2122 = vld [vmem:[%s4 + $0x20] sm:$0xff]
    %v2123 = vld [vmem:[%s4 + $0x28] sm:$0xff]
    %v2124 = vld [vmem:[%s4 + $0x30] sm:$0xff]
    %v2125 = vld [vmem:[%s4 + $0x38] sm:$0xff]
    %v2127 = vsel %vm754, %v2054, 0
    %v2130 = vsel %vm754, %v2055, 0
    %v2133 = vsel %vm754, %v2056, 0
    %v2136 = vsel %vm754, %v2057, 0
    %v2139 = vsel %vm754, %v2058, 0
    %v2142 = vsel %vm754, %v2059, 0
    %v2145 = vsel %vm754, %v2060, 0
    %v2148 = vsel %vm754, %v2061, 0
    %v2151 = vsel %vm754, %v2062, 0
    %v2154 = vsel %vm754, %v2063, 0
    %v2157 = vsel %vm754, %v2064, 0
    %v2160 = vsel %vm754, %v2065, 0
    %v2163 = vsel %vm754, %v2066, 0
    %v2166 = vsel %vm754, %v2067, 0
    %v2169 = vsel %vm754, %v2068, 0
    %v2172 = vsel %vm754, %v2069, 0
    %v2175 = vsel %vm754, %v2070, 0
    %v2178 = vsel %vm754, %v2071, 0
    %v2181 = vsel %vm754, %v2072, 0
    %v2184 = vsel %vm754, %v2073, 0
    %v2187 = vsel %vm754, %v2074, 0
    %v2190 = vsel %vm754, %v2075, 0
    %v2193 = vsel %vm754, %v2076, 0
    %v2196 = vsel %vm754, %v2077, 0
    %v2199 = vsel %vm754, %v2078, 0
    %v2202 = vsel %vm754, %v2079, 0
    %v2205 = vsel %vm754, %v2080, 0
    %v2208 = vsel %vm754, %v2081, 0
    %v2211 = vsel %vm754, %v2082, 0
    %v2214 = vsel %vm754, %v2083, 0
    %v2217 = vsel %vm754, %v2084, 0
    %v2220 = vsel %vm754, %v2085, 0
    %v2223 = vsel %vm754, %v2086, 0
    %v2226 = vsel %vm754, %v2087, 0
    %v2229 = vsel %vm754, %v2088, 0
    %v2232 = vsel %vm754, %v2089, 0
    %v2235 = vsel %vm754, %v2090, 0
    %v2238 = vsel %vm754, %v2091, 0
    %v2241 = vsel %vm754, %v2092, 0
    %v2244 = vsel %vm754, %v2093, 0
    %v2247 = vsel %vm754, %v2094, 0
    %v2250 = vsel %vm754, %v2095, 0
    %v2253 = vsel %vm754, %v2096, 0
    %v2256 = vsel %vm754, %v2097, 0
    %v2259 = vsel %vm754, %v2098, 0
    %v2262 = vsel %vm754, %v2099, 0
    %v2265 = vsel %vm754, %v2100, 0
    %v2268 = vsel %vm754, %v2101, 0
    %v2271 = vsel %vm754, %v2102, 0
    %v2274 = vsel %vm754, %v2103, 0
    %v2277 = vsel %vm754, %v2104, 0
    %v2280 = vsel %vm754, %v2105, 0
    %v2283 = vsel %vm754, %v2106, 0
    %v2286 = vsel %vm754, %v2107, 0
    %v2289 = vsel %vm754, %v2108, 0
    %v2292 = vsel %vm754, %v2109, 0
    %v2295 = vsel %vm754, %v2110, 0
    %v2298 = vsel %vm754, %v2111, 0
    %v2301 = vsel %vm754, %v2112, 0
    %v2304 = vsel %vm754, %v2113, 0
    %v2307 = vsel %vm754, %v2114, 0
    %v2310 = vsel %vm754, %v2115, 0
    %v2313 = vsel %vm754, %v2116, 0
    %v2316 = vsel %vm754, %v2117, 0
    %2318 = vmatprep.subr.mxu0 0.0
    %2319 = vmatpush1.msra.mxu0 %v2118
    %2320 = vmatprep.subr.mxu0 0.0
    %2321 = vmatpush1.msra.mxu0 %v2119
    %2322 = vmatprep.subr.mxu0 0.0
    %2323 = vmatpush1.msra.mxu0 %v2120
    %2324 = vmatprep.subr.mxu0 0.0
    %2325 = vmatpush1.msra.mxu0 %v2121
    %2326 = vmatprep.subr.mxu0 0.0
    %2327 = vmatpush1.msra.mxu0 %v2122
    %2328 = vmatprep.subr.mxu0 0.0
    %2329 = vmatpush1.msra.mxu0 %v2123
    %2330 = vmatprep.subr.mxu0 0.0
    %2331 = vmatpush1.msra.mxu0 %v2124
    %2332 = vmatprep.subr.mxu0 0.0
    %2333 = vmatpush1.msra.mxu0 %v2125
    %2334 = vmatprep.subr.mxu0 0.0
    %2335 = vmatpush1.msra.mxu0 0.0
    %2336 = vmatprep.subr.mxu0 0.0
    %2337 = vmatpush1.msra.mxu0 0.0
    %2338 = vmatprep.subr.mxu0 0.0
    %2339 = vmatpush1.msra.mxu0 0.0
    %2340 = vmatprep.subr.mxu0 0.0
    %2341 = vmatpush1.msra.mxu0 0.0
    %2342 = vmatprep.subr.mxu0 0.0
    %2343 = vmatpush1.msra.mxu0 0.0
    %2344 = vmatprep.subr.mxu0 0.0
    %2345 = vmatpush1.msra.mxu0 0.0
    %2346 = vmatprep.subr.mxu0 0.0
    %2347 = vmatpush1.msra.mxu0 0.0
    %2348 = vmatprep.subr.mxu0 0.0
    %2349 = vmatpush1.msra.mxu0 0.0
    %2350 = vmatprep.subr.mxu0 0.0
    %2351 = vmatpush1.msra.mxu0 0.0
    %2352 = vmatprep.subr.mxu0 0.0
    %2353 = vmatpush1.msra.mxu0 0.0
    %2354 = vmatprep.subr.mxu0 0.0
    %2355 = vmatpush1.msra.mxu0 0.0
    %2356 = vmatprep.subr.mxu0 0.0
    %2357 = vmatpush1.msra.mxu0 0.0
    %2358 = vmatprep.subr.mxu0 0.0
    %2359 = vmatpush1.msra.mxu0 0.0
    %2360 = vmatprep.subr.mxu0 0.0
    %2361 = vmatpush1.msra.mxu0 0.0
    %2362 = vmatprep.subr.mxu0 0.0
    %2363 = vmatpush1.msra.mxu0 0.0
    %2364 = vmatprep.subr.mxu0 0.0
    %2365 = vmatpush1.msra.mxu0 0.0
    %2366 = vmatprep.subr.mxu0 0.0
    %2367 = vmatpush1.msra.mxu0 0.0
    %2368 = vmatprep.subr.mxu0 0.0
    %2369 = vmatpush1.msra.mxu0 0.0
    %2370 = vmatprep.subr.mxu0 0.0
    %2371 = vmatpush1.msra.mxu0 0.0
    %2372 = vmatprep.subr.mxu0 0.0
    %2373 = vmatpush1.msra.mxu0 0.0
    %2374 = vmatprep.subr.mxu0 0.0
    %2375 = vmatpush1.msra.mxu0 0.0
    %2376 = vmatprep.subr.mxu0 0.0
    %2377 = vmatpush1.msra.mxu0 0.0
    %2378 = vmatprep.subr.mxu0 0.0
    %2379 = vmatpush1.msra.mxu0 0.0
    %2380 = vmatprep.subr.mxu0 0.0
    %2381 = vmatpush1.msra.mxu0 0.0
    %2382 = vmatprep.mubr.f32.mxu0 0.0
    %2383 = vmatmul.mubr.f32.gmra.mrb[0].mxu0 %v2127
    %v2384 = vpop.f32.mrb[0].mxu0
    %v2385 = vadd.f32 0.0, %v2384
    %v2386 = vpop.f32.mrb[0].mxu0
    %2387 = vmatprep.mubr.f32.mxu0 0.0
    %2388 = vmatmul.mubr.f32.gmra.mrb[0].mxu0 %v2130
    %v2389 = vpop.f32.mrb[0].mxu0
    %v2390 = vadd.f32 0.0, %v2389
    %v2391 = vpop.f32.mrb[0].mxu0
    %2392 = vmatprep.mubr.f32.mxu0 0.0
    %2393 = vmatmul.mubr.f32.gmra.mrb[0].mxu0 %v2133
    %v2394 = vpop.f32.mrb[0].mxu0
    %v2395 = vadd.f32 0.0, %v2394
    %v2396 = vpop.f32.mrb[0].mxu0
    %2397 = vmatprep.mubr.f32.mxu0 0.0
    %2398 = vmatmul.mubr.f32.gmra.mrb[0].mxu0 %v2136
    %v2399 = vpop.f32.mrb[0].mxu0
    %v2400 = vadd.f32 0.0, %v2399
    %v2401 = vpop.f32.mrb[0].mxu0
    %2402 = vmatprep.mubr.f32.mxu0 0.0
    %2403 = vmatmul.mubr.f32.gmra.mrb[0].mxu0 %v2139
    %v2404 = vpop.f32.mrb[0].mxu0
    %v2405 = vadd.f32 0.0, %v2404
    %v2406 = vpop.f32.mrb[0].mxu0
    %2407 = vmatprep.mubr.f32.mxu0 0.0
    %2408 = vmatmul.mubr.f32.gmra.mrb[0].mxu0 %v2142
    %v2409 = vpop.f32.mrb[0].mxu0
    %v2410 = vadd.f32 0.0, %v2409
    %v2411 = vpop.f32.mrb[0].mxu0
    %2412 = vmatprep.mubr.f32.mxu0 0.0
    %2413 = vmatmul.mubr.f32.gmra.mrb[0].mxu0 %v2145
    %v2414 = vpop.f32.mrb[0].mxu0
    %v2415 = vadd.f32 0.0, %v2414
    %v2416 = vpop.f32.mrb[0].mxu0
    %2417 = vmatprep.mubr.f32.mxu0 0.0
    %2418 = vmatmul.mubr.f32.gmra.mrb[0].mxu0 %v2148
    %v2419 = vpop.f32.mrb[0].mxu0
    %v2420 = vadd.f32 0.0, %v2419
    %v2421 = vpop.f32.mrb[0].mxu0
    %2422 = vmatprep.mubr.f32.mxu0 0.0
    %2423 = vmatmul.mubr.f32.gmra.mrb[0].mxu0 %v2151
    %v2424 = vpop.f32.mrb[0].mxu0
    %v2425 = vadd.f32 0.0, %v2424
    %v2426 = vpop.f32.mrb[0].mxu0
    %2427 = vmatprep.mubr.f32.mxu0 0.0
    %2428 = vmatmul.mubr.f32.gmra.mrb[0].mxu0 %v2154
    %v2429 = vpop.f32.mrb[0].mxu0
    %v2430 = vadd.f32 0.0, %v2429
    %v2431 = vpop.f32.mrb[0].mxu0
    %2432 = vmatprep.mubr.f32.mxu0 0.0
    %2433 = vmatmul.mubr.f32.gmra.mrb[0].mxu0 %v2157
    %v2434 = vpop.f32.mrb[0].mxu0
    %v2435 = vadd.f32 0.0, %v2434
    %v2436 = vpop.f32.mrb[0].mxu0
    %2437 = vmatprep.mubr.f32.mxu0 0.0
    %2438 = vmatmul.mubr.f32.gmra.mrb[0].mxu0 %v2160
    %v2439 = vpop.f32.mrb[0].mxu0
    %v2440 = vadd.f32 0.0, %v2439
    %v2441 = vpop.f32.mrb[0].mxu0
    %2442 = vmatprep.mubr.f32.mxu0 0.0
    %2443 = vmatmul.mubr.f32.gmra.mrb[0].mxu0 %v2163
    %v2444 = vpop.f32.mrb[0].mxu0
    %v2445 = vadd.f32 0.0, %v2444
    %v2446 = vpop.f32.mrb[0].mxu0
    %2447 = vmatprep.mubr.f32.mxu0 0.0
    %2448 = vmatmul.mubr.f32.gmra.mrb[0].mxu0 %v2166
    %v2449 = vpop.f32.mrb[0].mxu0
    %v2450 = vadd.f32 0.0, %v2449
    %v2451 = vpop.f32.mrb[0].mxu0
    %2452 = vmatprep.mubr.f32.mxu0 0.0
    %2453 = vmatmul.mubr.f32.gmra.mrb[0].mxu0 %v2169
    %v2454 = vpop.f32.mrb[0].mxu0
    %v2455 = vadd.f32 0.0, %v2454
    %v2456 = vpop.f32.mrb[0].mxu0
    %2457 = vmatprep.mubr.f32.mxu0 0.0
    %2458 = vmatmul.mubr.f32.gmra.mrb[0].mxu0 %v2172
    %v2459 = vpop.f32.mrb[0].mxu0
    %v2460 = vadd.f32 0.0, %v2459
    %v2461 = vpop.f32.mrb[0].mxu0
    %2462 = vmatprep.mubr.f32.mxu0 0.0
    %2463 = vmatmul.mubr.f32.gmra.mrb[0].mxu0 %v2175
    %v2464 = vpop.f32.mrb[0].mxu0
    %v2465 = vadd.f32 0.0, %v2464
    %v2466 = vpop.f32.mrb[0].mxu0
    %2467 = vmatprep.mubr.f32.mxu0 0.0
    %2468 = vmatmul.mubr.f32.gmra.mrb[0].mxu0 %v2178
    %v2469 = vpop.f32.mrb[0].mxu0
    %v2470 = vadd.f32 0.0, %v2469
    %v2471 = vpop.f32.mrb[0].mxu0
    %2472 = vmatprep.mubr.f32.mxu0 0.0
    %2473 = vmatmul.mubr.f32.gmra.mrb[0].mxu0 %v2181
    %v2474 = vpop.f32.mrb[0].mxu0
    %v2475 = vadd.f32 0.0, %v2474
    %v2476 = vpop.f32.mrb[0].mxu0
    %2477 = vmatprep.mubr.f32.mxu0 0.0
    %2478 = vmatmul.mubr.f32.gmra.mrb[0].mxu0 %v2184
    %v2479 = vpop.f32.mrb[0].mxu0
    %v2480 = vadd.f32 0.0, %v2479
    %v2481 = vpop.f32.mrb[0].mxu0
    %2482 = vmatprep.mubr.f32.mxu0 0.0
    %2483 = vmatmul.mubr.f32.gmra.mrb[0].mxu0 %v2187
    %v2484 = vpop.f32.mrb[0].mxu0
    %v2485 = vadd.f32 0.0, %v2484
    %v2486 = vpop.f32.mrb[0].mxu0
    %2487 = vmatprep.mubr.f32.mxu0 0.0
    %2488 = vmatmul.mubr.f32.gmra.mrb[0].mxu0 %v2190
    %v2489 = vpop.f32.mrb[0].mxu0
    %v2490 = vadd.f32 0.0, %v2489
    %v2491 = vpop.f32.mrb[0].mxu0
    %2492 = vmatprep.mubr.f32.mxu0 0.0
    %2493 = vmatmul.mubr.f32.gmra.mrb[0].mxu0 %v2193
    %v2494 = vpop.f32.mrb[0].mxu0
    %v2495 = vadd.f32 0.0, %v2494
    %v2496 = vpop.f32.mrb[0].mxu0
    %2497 = vmatprep.mubr.f32.mxu0 0.0
    %2498 = vmatmul.mubr.f32.gmra.mrb[0].mxu0 %v2196
    %v2499 = vpop.f32.mrb[0].mxu0
    %v2500 = vadd.f32 0.0, %v2499
    %v2501 = vpop.f32.mrb[0].mxu0
    %2502 = vmatprep.mubr.f32.mxu0 0.0
    %2503 = vmatmul.mubr.f32.gmra.mrb[0].mxu0 %v2199
    %v2504 = vpop.f32.mrb[0].mxu0
    %v2505 = vadd.f32 0.0, %v2504
    %v2506 = vpop.f32.mrb[0].mxu0
    %2507 = vmatprep.mubr.f32.mxu0 0.0
    %2508 = vmatmul.mubr.f32.gmra.mrb[0].mxu0 %v2202
    %v2509 = vpop.f32.mrb[0].mxu0
    %v2510 = vadd.f32 0.0, %v2509
    %v2511 = vpop.f32.mrb[0].mxu0
    %2512 = vmatprep.mubr.f32.mxu0 0.0
    %2513 = vmatmul.mubr.f32.gmra.mrb[0].mxu0 %v2205
    %v2514 = vpop.f32.mrb[0].mxu0
    %v2515 = vadd.f32 0.0, %v2514
    %v2516 = vpop.f32.mrb[0].mxu0
    %2517 = vmatprep.mubr.f32.mxu0 0.0
    %2518 = vmatmul.mubr.f32.gmra.mrb[0].mxu0 %v2208
    %v2519 = vpop.f32.mrb[0].mxu0
    %v2520 = vadd.f32 0.0, %v2519
    %v2521 = vpop.f32.mrb[0].mxu0
    %2522 = vmatprep.mubr.f32.mxu0 0.0
    %2523 = vmatmul.mubr.f32.gmra.mrb[0].mxu0 %v2211
    %v2524 = vpop.f32.mrb[0].mxu0
    %v2525 = vadd.f32 0.0, %v2524
    %v2526 = vpop.f32.mrb[0].mxu0
    %2527 = vmatprep.mubr.f32.mxu0 0.0
    %2528 = vmatmul.mubr.f32.gmra.mrb[0].mxu0 %v2214
    %v2529 = vpop.f32.mrb[0].mxu0
    %v2530 = vadd.f32 0.0, %v2529
    %v2531 = vpop.f32.mrb[0].mxu0
    %2532 = vmatprep.mubr.f32.mxu0 0.0
    %2533 = vmatmul.mubr.f32.gmra.mrb[0].mxu0 %v2217
    %v2534 = vpop.f32.mrb[0].mxu0
    %v2535 = vadd.f32 0.0, %v2534
    %v2536 = vpop.f32.mrb[0].mxu0
    %2537 = vmatprep.mubr.f32.mxu0 0.0
    %2538 = vmatmul.mubr.f32.gmra.mrb[0].mxu0 %v2220
    %v2539 = vpop.f32.mrb[0].mxu0
    %v2540 = vadd.f32 0.0, %v2539
    %v2541 = vpop.f32.mrb[0].mxu0
    %2542 = vmatprep.mubr.f32.mxu0 0.0
    %2543 = vmatmul.mubr.f32.gmra.mrb[0].mxu0 %v2223
    %v2544 = vpop.f32.mrb[0].mxu0
    %v2545 = vadd.f32 0.0, %v2544
    %v2546 = vpop.f32.mrb[0].mxu0
    %2547 = vmatprep.mubr.f32.mxu0 0.0
    %2548 = vmatmul.mubr.f32.gmra.mrb[0].mxu0 %v2226
    %v2549 = vpop.f32.mrb[0].mxu0
    %v2550 = vadd.f32 0.0, %v2549
    %v2551 = vpop.f32.mrb[0].mxu0
    %2552 = vmatprep.mubr.f32.mxu0 0.0
    %2553 = vmatmul.mubr.f32.gmra.mrb[0].mxu0 %v2229
    %v2554 = vpop.f32.mrb[0].mxu0
    %v2555 = vadd.f32 0.0, %v2554
    %v2556 = vpop.f32.mrb[0].mxu0
    %2557 = vmatprep.mubr.f32.mxu0 0.0
    %2558 = vmatmul.mubr.f32.gmra.mrb[0].mxu0 %v2232
    %v2559 = vpop.f32.mrb[0].mxu0
    %v2560 = vadd.f32 0.0, %v2559
    %v2561 = vpop.f32.mrb[0].mxu0
    %2562 = vmatprep.mubr.f32.mxu0 0.0
    %2563 = vmatmul.mubr.f32.gmra.mrb[0].mxu0 %v2235
    %v2564 = vpop.f32.mrb[0].mxu0
    %v2565 = vadd.f32 0.0, %v2564
    %v2566 = vpop.f32.mrb[0].mxu0
    %2567 = vmatprep.mubr.f32.mxu0 0.0
    %2568 = vmatmul.mubr.f32.gmra.mrb[0].mxu0 %v2238
    %v2569 = vpop.f32.mrb[0].mxu0
    %v2570 = vadd.f32 0.0, %v2569
    %v2571 = vpop.f32.mrb[0].mxu0
    %2572 = vmatprep.mubr.f32.mxu0 0.0
    %2573 = vmatmul.mubr.f32.gmra.mrb[0].mxu0 %v2241
    %v2574 = vpop.f32.mrb[0].mxu0
    %v2575 = vadd.f32 0.0, %v2574
    %v2576 = vpop.f32.mrb[0].mxu0
    %2577 = vmatprep.mubr.f32.mxu0 0.0
    %2578 = vmatmul.mubr.f32.gmra.mrb[0].mxu0 %v2244
    %v2579 = vpop.f32.mrb[0].mxu0
    %v2580 = vadd.f32 0.0, %v2579
    %v2581 = vpop.f32.mrb[0].mxu0
    %2582 = vmatprep.mubr.f32.mxu0 0.0
    %2583 = vmatmul.mubr.f32.gmra.mrb[0].mxu0 %v2247
    %v2584 = vpop.f32.mrb[0].mxu0
    %v2585 = vadd.f32 0.0, %v2584
    %v2586 = vpop.f32.mrb[0].mxu0
    %2587 = vmatprep.mubr.f32.mxu0 0.0
    %2588 = vmatmul.mubr.f32.gmra.mrb[0].mxu0 %v2250
    %v2589 = vpop.f32.mrb[0].mxu0
    %v2590 = vadd.f32 0.0, %v2589
    %v2591 = vpop.f32.mrb[0].mxu0
    %2592 = vmatprep.mubr.f32.mxu0 0.0
    %2593 = vmatmul.mubr.f32.gmra.mrb[0].mxu0 %v2253
    %v2594 = vpop.f32.mrb[0].mxu0
    %v2595 = vadd.f32 0.0, %v2594
    %v2596 = vpop.f32.mrb[0].mxu0
    %2597 = vmatprep.mubr.f32.mxu0 0.0
    %2598 = vmatmul.mubr.f32.gmra.mrb[0].mxu0 %v2256
    %v2599 = vpop.f32.mrb[0].mxu0
    %v2600 = vadd.f32 0.0, %v2599
    %v2601 = vpop.f32.mrb[0].mxu0
    %2602 = vmatprep.mubr.f32.mxu0 0.0
    %2603 = vmatmul.mubr.f32.gmra.mrb[0].mxu0 %v2259
    %v2604 = vpop.f32.mrb[0].mxu0
    %v2605 = vadd.f32 0.0, %v2604
    %v2606 = vpop.f32.mrb[0].mxu0
    %2607 = vmatprep.mubr.f32.mxu0 0.0
    %2608 = vmatmul.mubr.f32.gmra.mrb[0].mxu0 %v2262
    %v2609 = vpop.f32.mrb[0].mxu0
    %v2610 = vadd.f32 0.0, %v2609
    %v2611 = vpop.f32.mrb[0].mxu0
    %2612 = vmatprep.mubr.f32.mxu0 0.0
    %2613 = vmatmul.mubr.f32.gmra.mrb[0].mxu0 %v2265
    %v2614 = vpop.f32.mrb[0].mxu0
    %v2615 = vadd.f32 0.0, %v2614
    %v2616 = vpop.f32.mrb[0].mxu0
    %2617 = vmatprep.mubr.f32.mxu0 0.0
    %2618 = vmatmul.mubr.f32.gmra.mrb[0].mxu0 %v2268
    %v2619 = vpop.f32.mrb[0].mxu0
    %v2620 = vadd.f32 0.0, %v2619
    %v2621 = vpop.f32.mrb[0].mxu0
    %2622 = vmatprep.mubr.f32.mxu0 0.0
    %2623 = vmatmul.mubr.f32.gmra.mrb[0].mxu0 %v2271
    %v2624 = vpop.f32.mrb[0].mxu0
    %v2625 = vadd.f32 0.0, %v2624
    %v2626 = vpop.f32.mrb[0].mxu0
    %2627 = vmatprep.mubr.f32.mxu0 0.0
    %2628 = vmatmul.mubr.f32.gmra.mrb[0].mxu0 %v2274
    %v2629 = vpop.f32.mrb[0].mxu0
    %v2630 = vadd.f32 0.0, %v2629
    %v2631 = vpop.f32.mrb[0].mxu0
    %2632 = vmatprep.mubr.f32.mxu0 0.0
    %2633 = vmatmul.mubr.f32.gmra.mrb[0].mxu0 %v2277
    %v2634 = vpop.f32.mrb[0].mxu0
    %v2635 = vadd.f32 0.0, %v2634
    %v2636 = vpop.f32.mrb[0].mxu0
    %2637 = vmatprep.mubr.f32.mxu0 0.0
    %2638 = vmatmul.mubr.f32.gmra.mrb[0].mxu0 %v2280
    %v2639 = vpop.f32.mrb[0].mxu0
    %v2640 = vadd.f32 0.0, %v2639
    %v2641 = vpop.f32.mrb[0].mxu0
    %2642 = vmatprep.mubr.f32.mxu0 0.0
    %2643 = vmatmul.mubr.f32.gmra.mrb[0].mxu0 %v2283
    %v2644 = vpop.f32.mrb[0].mxu0
    %v2645 = vadd.f32 0.0, %v2644
    %v2646 = vpop.f32.mrb[0].mxu0
    %2647 = vmatprep.mubr.f32.mxu0 0.0
    %2648 = vmatmul.mubr.f32.gmra.mrb[0].mxu0 %v2286
    %v2649 = vpop.f32.mrb[0].mxu0
    %v2650 = vadd.f32 0.0, %v2649
    %v2651 = vpop.f32.mrb[0].mxu0
    %2652 = vmatprep.mubr.f32.mxu0 0.0
    %2653 = vmatmul.mubr.f32.gmra.mrb[0].mxu0 %v2289
    %v2654 = vpop.f32.mrb[0].mxu0
    %v2655 = vadd.f32 0.0, %v2654
    %v2656 = vpop.f32.mrb[0].mxu0
    %2657 = vmatprep.mubr.f32.mxu0 0.0
    %2658 = vmatmul.mubr.f32.gmra.mrb[0].mxu0 %v2292
    %v2659 = vpop.f32.mrb[0].mxu0
    %v2660 = vadd.f32 0.0, %v2659
    %v2661 = vpop.f32.mrb[0].mxu0
    %2662 = vmatprep.mubr.f32.mxu0 0.0
    %2663 = vmatmul.mubr.f32.gmra.mrb[0].mxu0 %v2295
    %v2664 = vpop.f32.mrb[0].mxu0
    %v2665 = vadd.f32 0.0, %v2664
    %v2666 = vpop.f32.mrb[0].mxu0
    %2667 = vmatprep.mubr.f32.mxu0 0.0
    %2668 = vmatmul.mubr.f32.gmra.mrb[0].mxu0 %v2298
    %v2669 = vpop.f32.mrb[0].mxu0
    %v2670 = vadd.f32 0.0, %v2669
    %v2671 = vpop.f32.mrb[0].mxu0
    %2672 = vmatprep.mubr.f32.mxu0 0.0
    %2673 = vmatmul.mubr.f32.gmra.mrb[0].mxu0 %v2301
    %v2674 = vpop.f32.mrb[0].mxu0
    %v2675 = vadd.f32 0.0, %v2674
    %v2676 = vpop.f32.mrb[0].mxu0
    %2677 = vmatprep.mubr.f32.mxu0 0.0
    %2678 = vmatmul.mubr.f32.gmra.mrb[0].mxu0 %v2304
    %v2679 = vpop.f32.mrb[0].mxu0
    %v2680 = vadd.f32 0.0, %v2679
    %v2681 = vpop.f32.mrb[0].mxu0
    %2682 = vmatprep.mubr.f32.mxu0 0.0
    %2683 = vmatmul.mubr.f32.gmra.mrb[0].mxu0 %v2307
    %v2684 = vpop.f32.mrb[0].mxu0
    %v2685 = vadd.f32 0.0, %v2684
    %v2686 = vpop.f32.mrb[0].mxu0
    %2687 = vmatprep.mubr.f32.mxu0 0.0
    %2688 = vmatmul.mubr.f32.gmra.mrb[0].mxu0 %v2310
    %v2689 = vpop.f32.mrb[0].mxu0
    %v2690 = vadd.f32 0.0, %v2689
    %v2691 = vpop.f32.mrb[0].mxu0
    %2692 = vmatprep.mubr.f32.mxu0 0.0
    %2693 = vmatmul.mubr.f32.gmra.mrb[0].mxu0 %v2313
    %v2694 = vpop.f32.mrb[0].mxu0
    %v2695 = vadd.f32 0.0, %v2694
    %v2696 = vpop.f32.mrb[0].mxu0
    %2697 = vmatprep.mubr.f32.mxu0 0.0
    %2698 = vmatmul.mubr.f32.gmra.mrb[0].mxu0 %v2316
    %v2699 = vpop.f32.mrb[0].mxu0
    %v2700 = vadd.f32 0.0, %v2699
    %v2701 = vpop.f32.mrb[0].mxu0
    %2702 = vdwg.mxu0
    %2703 = vxpose.xlu0.b32.start [1/16] %v2385, 128
    %2704 = vxpose.xlu0.b32.cont [2/16] %v2390, 128
    %2705 = vxpose.xlu0.b32.cont [3/16] %v2395, 128
    %2706 = vxpose.xlu0.b32.cont [4/16] %v2400, 128
    %2707 = vxpose.xlu0.b32.cont [5/16] %v2405, 128
    %2708 = vxpose.xlu0.b32.cont [6/16] %v2410, 128
    %2709 = vxpose.xlu0.b32.cont [7/16] %v2415, 128
    %2710 = vxpose.xlu0.b32.cont [8/16] %v2420, 128
    %2711 = vxpose.xlu0.b32.cont [9/16] %v2425, 128
    %2712 = vxpose.xlu0.b32.cont [10/16] %v2430, 128
    %2713 = vxpose.xlu0.b32.cont [11/16] %v2435, 128
    %2714 = vxpose.xlu0.b32.cont [12/16] %v2440, 128
    %2715 = vxpose.xlu0.b32.cont [13/16] %v2445, 128
    %2716 = vxpose.xlu0.b32.cont [14/16] %v2450, 128
    %2717 = vxpose.xlu0.b32.cont [15/16] %v2455, 128
    %2718 = vxpose.xlu0.b32.end [16/16] %v2460, 128
    %v2719 = vpop.trf.xlu0
    %v2720 = vpop.trf.xlu0
    %v2721 = vpop.trf.xlu0
    %v2722 = vpop.trf.xlu0
    %v2723 = vpop.trf.xlu0
    %v2724 = vpop.trf.xlu0
    %v2725 = vpop.trf.xlu0
    %v2726 = vpop.trf.xlu0
    %v2727 = vpop.trf.xlu0
    %v2728 = vpop.trf.xlu0
    %v2729 = vpop.trf.xlu0
    %v2730 = vpop.trf.xlu0
    %v2731 = vpop.trf.xlu0
    %v2732 = vpop.trf.xlu0
    %v2733 = vpop.trf.xlu0
    %v2734 = vpop.trf.xlu0
    %2735 = vxpose.xlu0.b32.start [1/16] %v2465, 128
    %2736 = vxpose.xlu0.b32.cont [2/16] %v2470, 128
    %2737 = vxpose.xlu0.b32.cont [3/16] %v2475, 128
    %2738 = vxpose.xlu0.b32.cont [4/16] %v2480, 128
    %2739 = vxpose.xlu0.b32.cont [5/16] %v2485, 128
    %2740 = vxpose.xlu0.b32.cont [6/16] %v2490, 128
    %2741 = vxpose.xlu0.b32.cont [7/16] %v2495, 128
    %2742 = vxpose.xlu0.b32.cont [8/16] %v2500, 128
    %2743 = vxpose.xlu0.b32.cont [9/16] %v2505, 128
    %2744 = vxpose.xlu0.b32.cont [10/16] %v2510, 128
    %2745 = vxpose.xlu0.b32.cont [11/16] %v2515, 128
    %2746 = vxpose.xlu0.b32.cont [12/16] %v2520, 128
    %2747 = vxpose.xlu0.b32.cont [13/16] %v2525, 128
    %2748 = vxpose.xlu0.b32.cont [14/16] %v2530, 128
    %2749 = vxpose.xlu0.b32.cont [15/16] %v2535, 128
    %2750 = vxpose.xlu0.b32.end [16/16] %v2540, 128
    %v2751 = vpop.trf.xlu0
    %v2752 = vpop.trf.xlu0
    %v2753 = vpop.trf.xlu0
    %v2754 = vpop.trf.xlu0
    %v2755 = vpop.trf.xlu0
    %v2756 = vpop.trf.xlu0
    %v2757 = vpop.trf.xlu0
    %v2758 = vpop.trf.xlu0
    %v2759 = vpop.trf.xlu0
    %v2760 = vpop.trf.xlu0
    %v2761 = vpop.trf.xlu0
    %v2762 = vpop.trf.xlu0
    %v2763 = vpop.trf.xlu0
    %v2764 = vpop.trf.xlu0
    %v2765 = vpop.trf.xlu0
    %v2766 = vpop.trf.xlu0
    %2767 = vxpose.xlu0.b32.start [1/16] %v2545, 128
    %2768 = vxpose.xlu0.b32.cont [2/16] %v2550, 128
    %2769 = vxpose.xlu0.b32.cont [3/16] %v2555, 128
    %2770 = vxpose.xlu0.b32.cont [4/16] %v2560, 128
    %2771 = vxpose.xlu0.b32.cont [5/16] %v2565, 128
    %2772 = vxpose.xlu0.b32.cont [6/16] %v2570, 128
    %2773 = vxpose.xlu0.b32.cont [7/16] %v2575, 128
    %2774 = vxpose.xlu0.b32.cont [8/16] %v2580, 128
    %2775 = vxpose.xlu0.b32.cont [9/16] %v2585, 128
    %2776 = vxpose.xlu0.b32.cont [10/16] %v2590, 128
    %2777 = vxpose.xlu0.b32.cont [11/16] %v2595, 128
    %2778 = vxpose.xlu0.b32.cont [12/16] %v2600, 128
    %2779 = vxpose.xlu0.b32.cont [13/16] %v2605, 128
    %2780 = vxpose.xlu0.b32.cont [14/16] %v2610, 128
    %2781 = vxpose.xlu0.b32.cont [15/16] %v2615, 128
    %2782 = vxpose.xlu0.b32.end [16/16] %v2620, 128
    %v2783 = vpop.trf.xlu0
    %v2784 = vpop.trf.xlu0
    %v2785 = vpop.trf.xlu0
    %v2786 = vpop.trf.xlu0
    %v2787 = vpop.trf.xlu0
    %v2788 = vpop.trf.xlu0
    %v2789 = vpop.trf.xlu0
    %v2790 = vpop.trf.xlu0
    %v2791 = vpop.trf.xlu0
    %v2792 = vpop.trf.xlu0
    %v2793 = vpop.trf.xlu0
    %v2794 = vpop.trf.xlu0
    %v2795 = vpop.trf.xlu0
    %v2796 = vpop.trf.xlu0
    %v2797 = vpop.trf.xlu0
    %v2798 = vpop.trf.xlu0
    %2799 = vxpose.xlu0.b32.start [1/16] %v2625, 128
    %2800 = vxpose.xlu0.b32.cont [2/16] %v2630, 128
    %2801 = vxpose.xlu0.b32.cont [3/16] %v2635, 128
    %2802 = vxpose.xlu0.b32.cont [4/16] %v2640, 128
    %2803 = vxpose.xlu0.b32.cont [5/16] %v2645, 128
    %2804 = vxpose.xlu0.b32.cont [6/16] %v2650, 128
    %2805 = vxpose.xlu0.b32.cont [7/16] %v2655, 128
    %2806 = vxpose.xlu0.b32.cont [8/16] %v2660, 128
    %2807 = vxpose.xlu0.b32.cont [9/16] %v2665, 128
    %2808 = vxpose.xlu0.b32.cont [10/16] %v2670, 128
    %2809 = vxpose.xlu0.b32.cont [11/16] %v2675, 128
    %2810 = vxpose.xlu0.b32.cont [12/16] %v2680, 128
    %2811 = vxpose.xlu0.b32.cont [13/16] %v2685, 128
    %2812 = vxpose.xlu0.b32.cont [14/16] %v2690, 128
    %2813 = vxpose.xlu0.b32.cont [15/16] %v2695, 128
    %2814 = vxpose.xlu0.b32.end [16/16] %v2700, 128
    %v2815 = vpop.trf.xlu0
    %v2816 = vpop.trf.xlu0
    %v2817 = vpop.trf.xlu0
    %v2818 = vpop.trf.xlu0
    %v2819 = vpop.trf.xlu0
    %v2820 = vpop.trf.xlu0
    %v2821 = vpop.trf.xlu0
    %v2822 = vpop.trf.xlu0
    %v2823 = vpop.trf.xlu0
    %v2824 = vpop.trf.xlu0
    %v2825 = vpop.trf.xlu0
    %v2826 = vpop.trf.xlu0
    %v2827 = vpop.trf.xlu0
    %v2828 = vpop.trf.xlu0
    %v2829 = vpop.trf.xlu0
    %v2830 = vpop.trf.xlu0
    %v2831 = vld [vmem:[%s5] sm:$0x1]
    %s2832 = vtos %v2831
    %v2833 = vstv %s2832
    %v2834 = vadd.f32 %v2719, %v2833
    %v2835 = vadd.f32 %v2751, %v2833
    %v2836 = vadd.f32 %v2783, %v2833
    %v2837 = vadd.f32 %v2815, %v2833
    %v2842 = vcombine.low %v2834, %v2835
    %v2843 = vcombine.low %v2836, %v2837
    %v2845 = vunpack.c.l.s4 1966171168
    %v2846 = vunpack.c.0.s8 %v2845
    %v2847 = vlaneseq
    %v2848 = vshrl.u32 %v2847, 7
    %v2849 = vsub.s32 %v2846, %v2848
    %v2850 = vrot.slane %v2842, %v2849
    %v2852 = vunpack.c.l.s4 1966171168
    %v2853 = vunpack.c.0.s8 %v2852
    %v2854 = vlaneseq
    %v2855 = vshrl.u32 %v2854, 7
    %v2856 = vsub.s32 %v2853, %v2855
    %v2857 = vrot.slane %v2843, %v2856
    %v2858 = vcombine.low %v2850, %v2857
    %v2860 = vunpack.c.l.s4 1966171168
    %v2861 = vunpack.c.0.s8 %v2860
    %v2862 = vlaneseq
    %v2863 = vshrl.u32 %v2862, 7
    %v2864 = vsub.s32 %v2861, %v2863
    %v2865 = vrot.slane %v2858, %v2864
    %v2867 = vlaneseq
    %vm2868 = vcmp.ge.s32.totalorder %v2867, 0
    %vm2869 = vcmp.lt.s32.totalorder %v2867, 512
    %vm2870 = vmand %vm2868, %vm2869
    %2871 = vst.msk [vmem:[#allocation2] sm:$0xf] %vm2870, %v2865
    // Predicated region
    $region26: #{tpu_custom_call.1} parent=1 // pred_check
      _
    $region27: #{tpu_custom_call.1} parent=1 // pred_check_branch
      %2873 = sbr.rel (0) target = $region29
    $region28: #{tpu_custom_call.1} parent=1 // pred_region
      %s2875 = ssub.s32 64, 64
      %2876 = vsyncadd [#allocation3], %s2875
      %s2878 = sshll.u32 [#allocation2], 4
      %s2879 = int_to_ptr.vmem [resolvable:$true] %s2878
      %2881 = dma.vmem_to_hbm [thread:$0]  %s2879, 64, %s6, [#allocation3]
    $region29: #{tpu_custom_call.1} parent=1 // pred_fallthru
      _
    // Predicated region
    $region30: #{tpu_custom_call.1} parent=1 // pred_check
      _
    $region31: #{tpu_custom_call.1} parent=1 // pred_check_branch
      %2883 = sbr.rel (0) target = $region33
    $region32: #{tpu_custom_call.1} parent=1 // pred_region
      %2884 = dma.done [#allocation3], 64
    $region33: #{tpu_custom_call.1} parent=1 // pred_fallthru
      _
    %2885 = vsyncpa [#allocation3], 1

</llo_original>
